<compile_context>
chip_gen: v7x
topology: tpu7x:2x2x1
jax: 0.10.0
libtpu: 0.0.40
codegen_flags: <defaults>
</compile_context>

<pallas_src>
import functools

import jax
import jax.numpy as jnp
from jax import lax
from jax.experimental import pallas as pl
from jax.experimental.pallas import tpu as pltpu


def _round_up(x: int, m: int) -> int:
    return ((x + m - 1) // m) * m


# ----------------------------- Pallas kernel ------------------------------- #
def _category_rnn_encoder_kernel(
    x_ref,        # (T, B, input_dim + 1)  raw x_obs, last channel = category id
    t_ref,        # (T, B, 1)              raw t_obs
    w_x_ref,      # (input_dim, 3G)        bbox -> gates weights (gate-padded)
    w_t_ref,      # (1, 3G)                t_diff -> gates weights (gate-padded)
    w_hh_ref,     # (G, 3G)                hidden -> gates weights (rows >= H are zero)
    b_ih_ref,     # (1, 3G)                gate-padded input bias
    b_hh_ref,     # (1, 3G)                gate-padded hidden bias
    w_lat_ref,    # (G, L)                 hidden -> latent weights (rows >= H zero)
    b_lat_ref,    # (1, L)
    emb_ref,      # (E, emb_dim)
    out_ref,      # (1, B, L + emb_dim)
):
    T = x_ref.shape[0]
    B = x_ref.shape[1]
    input_dim = w_x_ref.shape[0]
    G = w_hh_ref.shape[0]            # padded gate width (multiple of 128)
    E = emb_ref.shape[0]

    x_all = x_ref[...]               # (T, B, input_dim + 1)
    t_all = t_ref[...]               # (T, B, 1)

    # ---- category embedding: independent of the recurrence, issue it first ----
    cat = x_all[0, :, input_dim:input_dim + 1]            # (B, 1) float category id
    cat = jnp.clip(cat.astype(jnp.int32), 0, E - 1)       # .long() (trunc) + clamp
    ids = lax.broadcasted_iota(jnp.int32, (B, E), 1)
    onehot = (ids == cat).astype(jnp.float32)             # (B, E)
    z_emb = jnp.dot(onehot, emb_ref[...],
                    preferred_element_type=jnp.float32)   # (B, emb_dim)

    # ---- input path hoisted out of the recurrence (no loop-carried dependence) ----
    # t_diff[0] = 1, t_diff[t] = t[t] - t[t-1]
    dt = jnp.concatenate(
        [jnp.ones((1, B, 1), jnp.float32), t_all[1:] - t_all[:-1]], axis=0)  # (T, B, 1)
    gi = dt * w_t_ref[...] + b_ih_ref[...]                                    # (T, B, 3G)
    for f in range(input_dim):       # contraction dim is tiny -> plain VPU FMAs
        gi = gi + x_all[:, :, f:f + 1] * w_x_ref[f:f + 1, :]

    # ---- GRU recurrence: fully unrolled static loop (T is small & static) ----
    # Gate slices below are at multiples of G=128 lanes -> vreg-aligned, pure VPU.
    w_hh = w_hh_ref[...]                                   # loop-invariant load
    b_hh = jnp.broadcast_to(b_hh_ref[...], (B, 3 * G))     # broadcast hoisted
    h = jnp.zeros((B, G), jnp.float32)                     # padded lanes stay zero
    for t in range(T):
        gi_t = gi[t]                                                       # (B, 3G)
        gh = jnp.dot(h, w_hh, preferred_element_type=jnp.float32) + b_hh   # (B, 3G)
        r = jax.nn.sigmoid(gi_t[:, 0:G] + gh[:, 0:G])
        zg = jax.nn.sigmoid(gi_t[:, G:2 * G] + gh[:, G:2 * G])
        n = jnp.tanh(gi_t[:, 2 * G:3 * G] + r * gh[:, 2 * G:3 * G])
        h = (1.0 - zg) * n + zg * h

    # ---- hidden -> latent, concat with category embedding ----
    z_lat = jnp.dot(h, w_lat_ref[...],
                    preferred_element_type=jnp.float32) + b_lat_ref[...]   # (B, L)
    out_ref[...] = jnp.concatenate([z_lat, z_emb], axis=-1)[None]


# ------------------- One-time parameter re-layout (init) ------------------- #
def _pad_gates(m, H, G):
    """(..., 3H) -> (..., 3G): gate g occupies lanes [g*G, g*G + H), rest zero."""
    out = jnp.zeros(m.shape[:-1] + (3 * G,), jnp.float32)
    for g in range(3):
        out = out.at[..., g * G:g * G + H].set(m[..., g * H:(g + 1) * H])
    return out


def prepare_params(params, input_dim, lane=128):
    """Done ONCE at init: transpose + gate-pad all weights so the per-call wrapper
    has zero glue ops and all in-kernel gate slices are 128-lane aligned."""
    H = params["w_hh"].shape[1]
    G = _round_up(H, lane)
    L = params["w_lat"].shape[0]
    w_ih_t = jnp.asarray(params["w_ih"], jnp.float32).T          # (input_dim + 1, 3H)
    w_hh_t = jnp.asarray(params["w_hh"], jnp.float32).T          # (H, 3H)
    return {
        "w_x": _pad_gates(w_ih_t[:input_dim], H, G),             # (input_dim, 3G)
        "w_t": _pad_gates(w_ih_t[input_dim:input_dim + 1], H, G),  # (1, 3G)
        "w_hh": jnp.zeros((G, 3 * G), jnp.float32).at[:H, :].set(_pad_gates(w_hh_t, H, G)),
        "b_ih": _pad_gates(jnp.asarray(params["b_ih"], jnp.float32)[None, :], H, G),
        "b_hh": _pad_gates(jnp.asarray(params["b_hh"], jnp.float32)[None, :], H, G),
        "w_lat": jnp.zeros((G, L), jnp.float32).at[:H, :].set(
            jnp.asarray(params["w_lat"], jnp.float32).T),        # (G, L)
        "b_lat": jnp.asarray(params["b_lat"], jnp.float32)[None, :],  # (1, L)
        "emb": jnp.asarray(params["emb"], jnp.float32),          # (E, emb_dim)
        "input_dim": input_dim,
    }


# ------------------------------ Wrapper ------------------------------------ #
def category_rnn_encoder(x_obs, t_obs, prep):
    """x_obs: (T, B, input_dim + 1) float32, last channel = category id.
       t_obs: (T, B, 1) float32.  `prep` = prepare_params(...) output."""
    T, B, F = x_obs.shape
    assert F == prep["input_dim"] + 1, (F, prep["input_dim"])
    L = prep["w_lat"].shape[1]
    emb_dim = prep["emb"].shape[1]

    vmem = pl.BlockSpec(memory_space=pltpu.MemorySpace.VMEM)
    return pl.pallas_call(
        _category_rnn_encoder_kernel,
        out_shape=jax.ShapeDtypeStruct((1, B, L + emb_dim), jnp.float32),
        in_specs=[vmem] * 10,
        out_specs=vmem,
    )(x_obs.astype(jnp.float32), t_obs.astype(jnp.float32),
      prep["w_x"], prep["w_t"], prep["w_hh"], prep["b_ih"], prep["b_hh"],
      prep["w_lat"], prep["b_lat"], prep["emb"])


# ----------------------- Plain-JAX reference (checking) -------------------- #
def reference(x_obs, t_obs, params):
    bbox = x_obs[..., :-1]
    t_diff = jnp.concatenate(
        [jnp.ones_like(t_obs[:1]), t_obs[1:] - t_obs[:-1]], axis=0)
    xt = jnp.concatenate([bbox, t_diff], axis=-1)
    T, B, _ = xt.shape
    H = params["w_hh"].shape[1]

    def step(h, x_t):
        gi = x_t @ params["w_ih"].T + params["b_ih"]
        gh = h @ params["w_hh"].T + params["b_hh"]
        r = jax.nn.sigmoid(gi[:, :H] + gh[:, :H])
        z = jax.nn.sigmoid(gi[:, H:2 * H] + gh[:, H:2 * H])
        n = jnp.tanh(gi[:, 2 * H:] + r * gh[:, 2 * H:])
        return (1.0 - z) * n + z * h, None

    h, _ = lax.scan(step, jnp.zeros((B, H), jnp.float32), xt)
    z_lat = h @ params["w_lat"].T + params["b_lat"]
    cat = x_obs[0, :, -1].astype(jnp.int32)
    z_emb = params["emb"][cat]
    return jnp.concatenate([z_lat, z_emb], axis=-1)[None]


# --------------------------- Param construction ---------------------------- #
def init_params(key, input_dim, hidden_dim, latent_dim, num_embeddings, embedding_dim):
    D = input_dim + 1  # GRU input = bbox + relative time
    ks = jax.random.split(key, 7)
    kg = 1.0 / jnp.sqrt(hidden_dim)
    kl = 1.0 / jnp.sqrt(hidden_dim)
    return {
        "w_ih": jax.random.uniform(ks[0], (3 * hidden_dim, D), jnp.float32, -kg, kg),
        "w_hh": jax.random.uniform(ks[1], (3 * hidden_dim, hidden_dim), jnp.float32, -kg, kg),
        "b_ih": jax.random.uniform(ks[2], (3 * hidden_dim,), jnp.float32, -kg, kg),
        "b_hh": jax.random.uniform(ks[3], (3 * hidden_dim,), jnp.float32, -kg, kg),
        "w_lat": jax.random.uniform(ks[4], (latent_dim, hidden_dim), jnp.float32, -kl, kl),
        "b_lat": jax.random.uniform(ks[5], (latent_dim,), jnp.float32, -kl, kl),
        "emb": jax.random.normal(ks[6], (num_embeddings, embedding_dim), jnp.float32),
    }


if __name__ == "__main__":
    # Small shapes consistent with the module's forward.
    T, B = 8, 2
    input_dim = 4          # bbox features (x_obs has input_dim + 1 channels incl. category)
    hidden_dim = 32
    latent_dim = 16
    num_embeddings = 10
    embedding_dim = 8

    key = jax.random.PRNGKey(0)
    k_p, k_x, k_t = jax.random.split(key, 3)

    params = init_params(k_p, input_dim, hidden_dim, latent_dim,
                         num_embeddings, embedding_dim)
    prep = prepare_params(params, input_dim)   # one-time weight re-layout (init time)

    bbox_part = jax.random.normal(k_x, (T, B, input_dim), jnp.float32)
    cat_ids = jnp.array([3.0, 7.0], jnp.float32)                      # one category per track
    cat_part = jnp.broadcast_to(cat_ids[None, :, None], (T, B, 1))
    x_obs = jnp.concatenate([bbox_part, cat_part], axis=-1)           # (T, B, input_dim+1)

    t_obs = jnp.cumsum(
        jax.random.uniform(k_t, (T, B, 1), jnp.float32, 0.5, 1.5), axis=0)  # (T, B, 1)

    out = jax.block_until_ready(category_rnn_encoder(x_obs, t_obs, prep))
    ref = jax.block_until_ready(reference(x_obs, t_obs, params))

    assert out.shape == (1, B, latent_dim + embedding_dim), out.shape
    assert jnp.allclose(out, ref, atol=1e-3, rtol=1e-3), (
        float(jnp.max(jnp.abs(out - ref))))

    print("KERNEL_OK")
</pallas_src>

<mosaic_0001>
module attributes {stable_mosaic.version = 11 : i64} {
  func.func @_category_rnn_encoder_kernel(%arg0: memref<8x2x5xf32, #tpu.memory_space<vmem>>, %arg1: memref<8x2x1xf32, #tpu.memory_space<vmem>>, %arg2: memref<4x384xf32, #tpu.memory_space<vmem>>, %arg3: memref<1x384xf32, #tpu.memory_space<vmem>>, %arg4: memref<128x384xf32, #tpu.memory_space<vmem>>, %arg5: memref<1x384xf32, #tpu.memory_space<vmem>>, %arg6: memref<1x384xf32, #tpu.memory_space<vmem>>, %arg7: memref<128x16xf32, #tpu.memory_space<vmem>>, %arg8: memref<1x16xf32, #tpu.memory_space<vmem>>, %arg9: memref<10x8xf32, #tpu.memory_space<vmem>>, %arg10: memref<1x2x24xf32, #tpu.memory_space<vmem>>) attributes {dimension_semantics = [], scalar_prefetch = 0 : i64, scratch_operands = 0 : i64, tpu.core_type = #tpu.core_type<tc>} {
    %c0 = arith.constant 0 : index
    %c0_0 = arith.constant 0 : index
    %c0_1 = arith.constant 0 : index
    %0 = vector.load %arg0[%c0, %c0_0, %c0_1] : memref<8x2x5xf32, #tpu.memory_space<vmem>>, vector<8x2x5xf32>
    %c0_2 = arith.constant 0 : index
    %c0_3 = arith.constant 0 : index
    %c0_4 = arith.constant 0 : index
    %1 = vector.load %arg1[%c0_2, %c0_3, %c0_4] : memref<8x2x1xf32, #tpu.memory_space<vmem>>, vector<8x2x1xf32>
    %2 = vector.extract_strided_slice %0 {offsets = [0, 0, 4], sizes = [1, 2, 1], strides = [1, 1, 1]} : vector<8x2x5xf32> to vector<1x2x1xf32>
    %3 = vector.shape_cast %2 : vector<1x2x1xf32> to vector<2x1xf32>
    %4 = arith.fptosi %3 : vector<2x1xf32> to vector<2x1xi32>
    %c0_i32 = arith.constant 0 : i32
    %c9_i32 = arith.constant 9 : i32
    %5 = vector.broadcast %c0_i32 : i32 to vector<2x1xi32>
    %6 = arith.maxsi %5, %4 : vector<2x1xi32>
    %7 = vector.broadcast %c9_i32 : i32 to vector<2x1xi32>
    %8 = arith.minsi %7, %6 : vector<2x1xi32>
    %9 = tpu.iota {dimensions = array<i32: 1>} : vector<2x10xi32>
    %10 = vector.broadcast %8 : vector<2x1xi32> to vector<2x10xi32>
    %11 = arith.cmpi eq, %9, %10 : vector<2x10xi32>
    %12 = arith.extui %11 : vector<2x10xi1> to vector<2x10xi32>
    %13 = arith.sitofp %12 : vector<2x10xi32> to vector<2x10xf32>
    %c0_5 = arith.constant 0 : index
    %c0_6 = arith.constant 0 : index
    %14 = vector.load %arg9[%c0_5, %c0_6] : memref<10x8xf32, #tpu.memory_space<vmem>>, vector<10x8xf32>
    %cst = arith.constant dense<0.000000e+00> : vector<2x8xf32>
    %15 = tpu.matmul %13, %14, %cst {dimension_numbers = #tpu.dot_dimension_numbers<[1], [0], [0], [1], [0, 0, 1, 1], [], []>} : vector<2x10xf32>, vector<10x8xf32>, vector<2x8xf32> -> vector<2x8xf32>
    %cst_7 = arith.constant 1.000000e+00 : f32
    %16 = vector.broadcast %cst_7 : f32 to vector<1x2x1xf32>
    %17 = vector.extract_strided_slice %1 {offsets = [1, 0, 0], sizes = [7, 2, 1], strides = [1, 1, 1]} : vector<8x2x1xf32> to vector<7x2x1xf32>
    %18 = vector.extract_strided_slice %1 {offsets = [0, 0, 0], sizes = [7, 2, 1], strides = [1, 1, 1]} : vector<8x2x1xf32> to vector<7x2x1xf32>
    %19 = arith.subf %17, %18 : vector<7x2x1xf32>
    %20 = tpu.concatenate %16, %19 in 0 : vector<1x2x1xf32>, vector<7x2x1xf32> -> vector<8x2x1xf32>
    %c0_8 = arith.constant 0 : index
    %c0_9 = arith.constant 0 : index
    %21 = vector.load %arg3[%c0_8, %c0_9] : memref<1x384xf32, #tpu.memory_space<vmem>>, vector<1x384xf32>
    %22 = vector.shape_cast %21 : vector<1x384xf32> to vector<1x1x384xf32>
    %23 = vector.broadcast %20 : vector<8x2x1xf32> to vector<8x2x384xf32>
    %24 = vector.broadcast %22 : vector<1x1x384xf32> to vector<8x2x384xf32>
    %25 = arith.mulf %23, %24 : vector<8x2x384xf32>
    %c0_10 = arith.constant 0 : index
    %c0_11 = arith.constant 0 : index
    %26 = vector.load %arg5[%c0_10, %c0_11] : memref<1x384xf32, #tpu.memory_space<vmem>>, vector<1x384xf32>
    %27 = vector.shape_cast %26 : vector<1x384xf32> to vector<1x1x384xf32>
    %28 = vector.broadcast %27 : vector<1x1x384xf32> to vector<8x2x384xf32>
    %29 = arith.addf %25, %28 : vector<8x2x384xf32>
    %30 = vector.extract_strided_slice %0 {offsets = [0, 0, 0], sizes = [8, 2, 1], strides = [1, 1, 1]} : vector<8x2x5xf32> to vector<8x2x1xf32>
    %c0_12 = arith.constant 0 : index
    %c0_13 = arith.constant 0 : index
    %31 = vector.load %arg2[%c0_12, %c0_13] : memref<4x384xf32, #tpu.memory_space<vmem>>, vector<1x384xf32>
    %32 = vector.shape_cast %31 : vector<1x384xf32> to vector<1x1x384xf32>
    %33 = vector.broadcast %30 : vector<8x2x1xf32> to vector<8x2x384xf32>
    %34 = vector.broadcast %32 : vector<1x1x384xf32> to vector<8x2x384xf32>
    %35 = arith.mulf %33, %34 : vector<8x2x384xf32>
    %36 = arith.addf %29, %35 : vector<8x2x384xf32>
    %37 = vector.extract_strided_slice %0 {offsets = [0, 0, 1], sizes = [8, 2, 1], strides = [1, 1, 1]} : vector<8x2x5xf32> to vector<8x2x1xf32>
    %c1 = arith.constant 1 : index
    %c0_14 = arith.constant 0 : index
    %38 = vector.load %arg2[%c1, %c0_14] : memref<4x384xf32, #tpu.memory_space<vmem>>, vector<1x384xf32>
    %39 = vector.shape_cast %38 : vector<1x384xf32> to vector<1x1x384xf32>
    %40 = vector.broadcast %37 : vector<8x2x1xf32> to vector<8x2x384xf32>
    %41 = vector.broadcast %39 : vector<1x1x384xf32> to vector<8x2x384xf32>
    %42 = arith.mulf %40, %41 : vector<8x2x384xf32>
    %43 = arith.addf %36, %42 : vector<8x2x384xf32>
    %44 = vector.extract_strided_slice %0 {offsets = [0, 0, 2], sizes = [8, 2, 1], strides = [1, 1, 1]} : vector<8x2x5xf32> to vector<8x2x1xf32>
    %c2 = arith.constant 2 : index
    %c0_15 = arith.constant 0 : index
    %45 = vector.load %arg2[%c2, %c0_15] : memref<4x384xf32, #tpu.memory_space<vmem>>, vector<1x384xf32>
    %46 = vector.shape_cast %45 : vector<1x384xf32> to vector<1x1x384xf32>
    %47 = vector.broadcast %44 : vector<8x2x1xf32> to vector<8x2x384xf32>
    %48 = vector.broadcast %46 : vector<1x1x384xf32> to vector<8x2x384xf32>
    %49 = arith.mulf %47, %48 : vector<8x2x384xf32>
    %50 = arith.addf %43, %49 : vector<8x2x384xf32>
    %51 = vector.extract_strided_slice %0 {offsets = [0, 0, 3], sizes = [8, 2, 1], strides = [1, 1, 1]} : vector<8x2x5xf32> to vector<8x2x1xf32>
    %c3 = arith.constant 3 : index
    %c0_16 = arith.constant 0 : index
    %52 = vector.load %arg2[%c3, %c0_16] : memref<4x384xf32, #tpu.memory_space<vmem>>, vector<1x384xf32>
    %53 = vector.shape_cast %52 : vector<1x384xf32> to vector<1x1x384xf32>
    %54 = vector.broadcast %51 : vector<8x2x1xf32> to vector<8x2x384xf32>
    %55 = vector.broadcast %53 : vector<1x1x384xf32> to vector<8x2x384xf32>
    %56 = arith.mulf %54, %55 : vector<8x2x384xf32>
    %57 = arith.addf %50, %56 : vector<8x2x384xf32>
    %c0_17 = arith.constant 0 : index
    %c0_18 = arith.constant 0 : index
    %58 = vector.load %arg4[%c0_17, %c0_18] : memref<128x384xf32, #tpu.memory_space<vmem>>, vector<128x384xf32>
    %c0_19 = arith.constant 0 : index
    %c0_20 = arith.constant 0 : index
    %59 = vector.load %arg6[%c0_19, %c0_20] : memref<1x384xf32, #tpu.memory_space<vmem>>, vector<1x384xf32>
    %60 = vector.shape_cast %59 : vector<1x384xf32> to vector<1x384xf32>
    %61 = vector.broadcast %60 : vector<1x384xf32> to vector<2x384xf32>
    %cst_21 = arith.constant 0.000000e+00 : f32
    %62 = vector.broadcast %cst_21 : f32 to vector<2x128xf32>
    %63 = vector.extract_strided_slice %57 {offsets = [0, 0, 0], sizes = [1, 2, 384], strides = [1, 1, 1]} : vector<8x2x384xf32> to vector<1x2x384xf32>
    %64 = vector.shape_cast %63 : vector<1x2x384xf32> to vector<2x384xf32>
    %cst_22 = arith.constant dense<0.000000e+00> : vector<2x384xf32>
    %65 = tpu.matmul %62, %58, %cst_22 {dimension_numbers = #tpu.dot_dimension_numbers<[1], [0], [0], [1], [0, 0, 1, 1], [], []>} : vector<2x128xf32>, vector<128x384xf32>, vector<2x384xf32> -> vector<2x384xf32>
    %66 = arith.addf %65, %61 : vector<2x384xf32>
    %67 = vector.extract_strided_slice %64 {offsets = [0, 0], sizes = [2, 128], strides = [1, 1]} : vector<2x384xf32> to vector<2x128xf32>
    %68 = vector.extract_strided_slice %66 {offsets = [0, 0], sizes = [2, 128], strides = [1, 1]} : vector<2x384xf32> to vector<2x128xf32>
    %69 = arith.addf %67, %68 : vector<2x128xf32>
    %70 = arith.negf %69 : vector<2x128xf32>
    %71 = math.exp %70 : vector<2x128xf32>
    %cst_23 = arith.constant 1.000000e+00 : f32
    %72 = vector.broadcast %cst_23 : f32 to vector<2x128xf32>
    %73 = arith.addf %72, %71 : vector<2x128xf32>
    %74 = arith.divf %72, %73 : vector<2x128xf32>
    %75 = vector.extract_strided_slice %64 {offsets = [0, 128], sizes = [2, 128], strides = [1, 1]} : vector<2x384xf32> to vector<2x128xf32>
    %76 = vector.extract_strided_slice %66 {offsets = [0, 128], sizes = [2, 128], strides = [1, 1]} : vector<2x384xf32> to vector<2x128xf32>
    %77 = arith.addf %75, %76 : vector<2x128xf32>
    %78 = arith.negf %77 : vector<2x128xf32>
    %79 = math.exp %78 : vector<2x128xf32>
    %cst_24 = arith.constant 1.000000e+00 : f32
    %80 = vector.broadcast %cst_24 : f32 to vector<2x128xf32>
    %81 = arith.addf %80, %79 : vector<2x128xf32>
    %82 = arith.divf %80, %81 : vector<2x128xf32>
    %83 = vector.extract_strided_slice %64 {offsets = [0, 256], sizes = [2, 128], strides = [1, 1]} : vector<2x384xf32> to vector<2x128xf32>
    %84 = vector.extract_strided_slice %66 {offsets = [0, 256], sizes = [2, 128], strides = [1, 1]} : vector<2x384xf32> to vector<2x128xf32>
    %85 = arith.mulf %74, %84 : vector<2x128xf32>
    %86 = arith.addf %83, %85 : vector<2x128xf32>
    %87 = math.tanh %86 : vector<2x128xf32>
    %cst_25 = arith.constant 1.000000e+00 : f32
    %88 = vector.broadcast %cst_25 : f32 to vector<2x128xf32>
    %89 = arith.subf %88, %82 : vector<2x128xf32>
    %90 = arith.mulf %89, %87 : vector<2x128xf32>
    %91 = arith.mulf %82, %62 : vector<2x128xf32>
    %92 = arith.addf %90, %91 : vector<2x128xf32>
    %93 = vector.extract_strided_slice %57 {offsets = [1, 0, 0], sizes = [1, 2, 384], strides = [1, 1, 1]} : vector<8x2x384xf32> to vector<1x2x384xf32>
    %94 = vector.shape_cast %93 : vector<1x2x384xf32> to vector<2x384xf32>
    %cst_26 = arith.constant dense<0.000000e+00> : vector<2x384xf32>
    %95 = tpu.matmul %92, %58, %cst_26 {dimension_numbers = #tpu.dot_dimension_numbers<[1], [0], [0], [1], [0, 0, 1, 1], [], []>} : vector<2x128xf32>, vector<128x384xf32>, vector<2x384xf32> -> vector<2x384xf32>
    %96 = arith.addf %95, %61 : vector<2x384xf32>
    %97 = vector.extract_strided_slice %94 {offsets = [0, 0], sizes = [2, 128], strides = [1, 1]} : vector<2x384xf32> to vector<2x128xf32>
    %98 = vector.extract_strided_slice %96 {offsets = [0, 0], sizes = [2, 128], strides = [1, 1]} : vector<2x384xf32> to vector<2x128xf32>
    %99 = arith.addf %97, %98 : vector<2x128xf32>
    %100 = arith.negf %99 : vector<2x128xf32>
    %101 = math.exp %100 : vector<2x128xf32>
    %cst_27 = arith.constant 1.000000e+00 : f32
    %102 = vector.broadcast %cst_27 : f32 to vector<2x128xf32>
    %103 = arith.addf %102, %101 : vector<2x128xf32>
    %104 = arith.divf %102, %103 : vector<2x128xf32>
    %105 = vector.extract_strided_slice %94 {offsets = [0, 128], sizes = [2, 128], strides = [1, 1]} : vector<2x384xf32> to vector<2x128xf32>
    %106 = vector.extract_strided_slice %96 {offsets = [0, 128], sizes = [2, 128], strides = [1, 1]} : vector<2x384xf32> to vector<2x128xf32>
    %107 = arith.addf %105, %106 : vector<2x128xf32>
    %108 = arith.negf %107 : vector<2x128xf32>
    %109 = math.exp %108 : vector<2x128xf32>
    %cst_28 = arith.constant 1.000000e+00 : f32
    %110 = vector.broadcast %cst_28 : f32 to vector<2x128xf32>
    %111 = arith.addf %110, %109 : vector<2x128xf32>
    %112 = arith.divf %110, %111 : vector<2x128xf32>
    %113 = vector.extract_strided_slice %94 {offsets = [0, 256], sizes = [2, 128], strides = [1, 1]} : vector<2x384xf32> to vector<2x128xf32>
    %114 = vector.extract_strided_slice %96 {offsets = [0, 256], sizes = [2, 128], strides = [1, 1]} : vector<2x384xf32> to vector<2x128xf32>
    %115 = arith.mulf %104, %114 : vector<2x128xf32>
    %116 = arith.addf %113, %115 : vector<2x128xf32>
    %117 = math.tanh %116 : vector<2x128xf32>
    %cst_29 = arith.constant 1.000000e+00 : f32
    %118 = vector.broadcast %cst_29 : f32 to vector<2x128xf32>
    %119 = arith.subf %118, %112 : vector<2x128xf32>
    %120 = arith.mulf %119, %117 : vector<2x128xf32>
    %121 = arith.mulf %112, %92 : vector<2x128xf32>
    %122 = arith.addf %120, %121 : vector<2x128xf32>
    %123 = vector.extract_strided_slice %57 {offsets = [2, 0, 0], sizes = [1, 2, 384], strides = [1, 1, 1]} : vector<8x2x384xf32> to vector<1x2x384xf32>
    %124 = vector.shape_cast %123 : vector<1x2x384xf32> to vector<2x384xf32>
    %cst_30 = arith.constant dense<0.000000e+00> : vector<2x384xf32>
    %125 = tpu.matmul %122, %58, %cst_30 {dimension_numbers = #tpu.dot_dimension_numbers<[1], [0], [0], [1], [0, 0, 1, 1], [], []>} : vector<2x128xf32>, vector<128x384xf32>, vector<2x384xf32> -> vector<2x384xf32>
    %126 = arith.addf %125, %61 : vector<2x384xf32>
    %127 = vector.extract_strided_slice %124 {offsets = [0, 0], sizes = [2, 128], strides = [1, 1]} : vector<2x384xf32> to vector<2x128xf32>
    %128 = vector.extract_strided_slice %126 {offsets = [0, 0], sizes = [2, 128], strides = [1, 1]} : vector<2x384xf32> to vector<2x128xf32>
    %129 = arith.addf %127, %128 : vector<2x128xf32>
    %130 = arith.negf %129 : vector<2x128xf32>
    %131 = math.exp %130 : vector<2x128xf32>
    %cst_31 = arith.constant 1.000000e+00 : f32
    %132 = vector.broadcast %cst_31 : f32 to vector<2x128xf32>
    %133 = arith.addf %132, %131 : vector<2x128xf32>
    %134 = arith.divf %132, %133 : vector<2x128xf32>
    %135 = vector.extract_strided_slice %124 {offsets = [0, 128], sizes = [2, 128], strides = [1, 1]} : vector<2x384xf32> to vector<2x128xf32>
    %136 = vector.extract_strided_slice %126 {offsets = [0, 128], sizes = [2, 128], strides = [1, 1]} : vector<2x384xf32> to vector<2x128xf32>
    %137 = arith.addf %135, %136 : vector<2x128xf32>
    %138 = arith.negf %137 : vector<2x128xf32>
    %139 = math.exp %138 : vector<2x128xf32>
    %cst_32 = arith.constant 1.000000e+00 : f32
    %140 = vector.broadcast %cst_32 : f32 to vector<2x128xf32>
    %141 = arith.addf %140, %139 : vector<2x128xf32>
    %142 = arith.divf %140, %141 : vector<2x128xf32>
    %143 = vector.extract_strided_slice %124 {offsets = [0, 256], sizes = [2, 128], strides = [1, 1]} : vector<2x384xf32> to vector<2x128xf32>
    %144 = vector.extract_strided_slice %126 {offsets = [0, 256], sizes = [2, 128], strides = [1, 1]} : vector<2x384xf32> to vector<2x128xf32>
    %145 = arith.mulf %134, %144 : vector<2x128xf32>
    %146 = arith.addf %143, %145 : vector<2x128xf32>
    %147 = math.tanh %146 : vector<2x128xf32>
    %cst_33 = arith.constant 1.000000e+00 : f32
    %148 = vector.broadcast %cst_33 : f32 to vector<2x128xf32>
    %149 = arith.subf %148, %142 : vector<2x128xf32>
    %150 = arith.mulf %149, %147 : vector<2x128xf32>
    %151 = arith.mulf %142, %122 : vector<2x128xf32>
    %152 = arith.addf %150, %151 : vector<2x128xf32>
    %153 = vector.extract_strided_slice %57 {offsets = [3, 0, 0], sizes = [1, 2, 384], strides = [1, 1, 1]} : vector<8x2x384xf32> to vector<1x2x384xf32>
    %154 = vector.shape_cast %153 : vector<1x2x384xf32> to vector<2x384xf32>
    %cst_34 = arith.constant dense<0.000000e+00> : vector<2x384xf32>
    %155 = tpu.matmul %152, %58, %cst_34 {dimension_numbers = #tpu.dot_dimension_numbers<[1], [0], [0], [1], [0, 0, 1, 1], [], []>} : vector<2x128xf32>, vector<128x384xf32>, vector<2x384xf32> -> vector<2x384xf32>
    %156 = arith.addf %155, %61 : vector<2x384xf32>
    %157 = vector.extract_strided_slice %154 {offsets = [0, 0], sizes = [2, 128], strides = [1, 1]} : vector<2x384xf32> to vector<2x128xf32>
    %158 = vector.extract_strided_slice %156 {offsets = [0, 0], sizes = [2, 128], strides = [1, 1]} : vector<2x384xf32> to vector<2x128xf32>
    %159 = arith.addf %157, %158 : vector<2x128xf32>
    %160 = arith.negf %159 : vector<2x128xf32>
    %161 = math.exp %160 : vector<2x128xf32>
    %cst_35 = arith.constant 1.000000e+00 : f32
    %162 = vector.broadcast %cst_35 : f32 to vector<2x128xf32>
    %163 = arith.addf %162, %161 : vector<2x128xf32>
    %164 = arith.divf %162, %163 : vector<2x128xf32>
    %165 = vector.extract_strided_slice %154 {offsets = [0, 128], sizes = [2, 128], strides = [1, 1]} : vector<2x384xf32> to vector<2x128xf32>
    %166 = vector.extract_strided_slice %156 {offsets = [0, 128], sizes = [2, 128], strides = [1, 1]} : vector<2x384xf32> to vector<2x128xf32>
    %167 = arith.addf %165, %166 : vector<2x128xf32>
    %168 = arith.negf %167 : vector<2x128xf32>
    %169 = math.exp %168 : vector<2x128xf32>
    %cst_36 = arith.constant 1.000000e+00 : f32
    %170 = vector.broadcast %cst_36 : f32 to vector<2x128xf32>
    %171 = arith.addf %170, %169 : vector<2x128xf32>
    %172 = arith.divf %170, %171 : vector<2x128xf32>
    %173 = vector.extract_strided_slice %154 {offsets = [0, 256], sizes = [2, 128], strides = [1, 1]} : vector<2x384xf32> to vector<2x128xf32>
    %174 = vector.extract_strided_slice %156 {offsets = [0, 256], sizes = [2, 128], strides = [1, 1]} : vector<2x384xf32> to vector<2x128xf32>
    %175 = arith.mulf %164, %174 : vector<2x128xf32>
    %176 = arith.addf %173, %175 : vector<2x128xf32>
    %177 = math.tanh %176 : vector<2x128xf32>
    %cst_37 = arith.constant 1.000000e+00 : f32
    %178 = vector.broadcast %cst_37 : f32 to vector<2x128xf32>
    %179 = arith.subf %178, %172 : vector<2x128xf32>
    %180 = arith.mulf %179, %177 : vector<2x128xf32>
    %181 = arith.mulf %172, %152 : vector<2x128xf32>
    %182 = arith.addf %180, %181 : vector<2x128xf32>
    %183 = vector.extract_strided_slice %57 {offsets = [4, 0, 0], sizes = [1, 2, 384], strides = [1, 1, 1]} : vector<8x2x384xf32> to vector<1x2x384xf32>
    %184 = vector.shape_cast %183 : vector<1x2x384xf32> to vector<2x384xf32>
    %cst_38 = arith.constant dense<0.000000e+00> : vector<2x384xf32>
    %185 = tpu.matmul %182, %58, %cst_38 {dimension_numbers = #tpu.dot_dimension_numbers<[1], [0], [0], [1], [0, 0, 1, 1], [], []>} : vector<2x128xf32>, vector<128x384xf32>, vector<2x384xf32> -> vector<2x384xf32>
    %186 = arith.addf %185, %61 : vector<2x384xf32>
    %187 = vector.extract_strided_slice %184 {offsets = [0, 0], sizes = [2, 128], strides = [1, 1]} : vector<2x384xf32> to vector<2x128xf32>
    %188 = vector.extract_strided_slice %186 {offsets = [0, 0], sizes = [2, 128], strides = [1, 1]} : vector<2x384xf32> to vector<2x128xf32>
    %189 = arith.addf %187, %188 : vector<2x128xf32>
    %190 = arith.negf %189 : vector<2x128xf32>
    %191 = math.exp %190 : vector<2x128xf32>
    %cst_39 = arith.constant 1.000000e+00 : f32
    %192 = vector.broadcast %cst_39 : f32 to vector<2x128xf32>
    %193 = arith.addf %192, %191 : vector<2x128xf32>
    %194 = arith.divf %192, %193 : vector<2x128xf32>
    %195 = vector.extract_strided_slice %184 {offsets = [0, 128], sizes = [2, 128], strides = [1, 1]} : vector<2x384xf32> to vector<2x128xf32>
    %196 = vector.extract_strided_slice %186 {offsets = [0, 128], sizes = [2, 128], strides = [1, 1]} : vector<2x384xf32> to vector<2x128xf32>
    %197 = arith.addf %195, %196 : vector<2x128xf32>
    %198 = arith.negf %197 : vector<2x128xf32>
    %199 = math.exp %198 : vector<2x128xf32>
    %cst_40 = arith.constant 1.000000e+00 : f32
    %200 = vector.broadcast %cst_40 : f32 to vector<2x128xf32>
    %201 = arith.addf %200, %199 : vector<2x128xf32>
    %202 = arith.divf %200, %201 : vector<2x128xf32>
    %203 = vector.extract_strided_slice %184 {offsets = [0, 256], sizes = [2, 128], strides = [1, 1]} : vector<2x384xf32> to vector<2x128xf32>
    %204 = vector.extract_strided_slice %186 {offsets = [0, 256], sizes = [2, 128], strides = [1, 1]} : vector<2x384xf32> to vector<2x128xf32>
    %205 = arith.mulf %194, %204 : vector<2x128xf32>
    %206 = arith.addf %203, %205 : vector<2x128xf32>
    %207 = math.tanh %206 : vector<2x128xf32>
    %cst_41 = arith.constant 1.000000e+00 : f32
    %208 = vector.broadcast %cst_41 : f32 to vector<2x128xf32>
    %209 = arith.subf %208, %202 : vector<2x128xf32>
    %210 = arith.mulf %209, %207 : vector<2x128xf32>
    %211 = arith.mulf %202, %182 : vector<2x128xf32>
    %212 = arith.addf %210, %211 : vector<2x128xf32>
    %213 = vector.extract_strided_slice %57 {offsets = [5, 0, 0], sizes = [1, 2, 384], strides = [1, 1, 1]} : vector<8x2x384xf32> to vector<1x2x384xf32>
    %214 = vector.shape_cast %213 : vector<1x2x384xf32> to vector<2x384xf32>
    %cst_42 = arith.constant dense<0.000000e+00> : vector<2x384xf32>
    %215 = tpu.matmul %212, %58, %cst_42 {dimension_numbers = #tpu.dot_dimension_numbers<[1], [0], [0], [1], [0, 0, 1, 1], [], []>} : vector<2x128xf32>, vector<128x384xf32>, vector<2x384xf32> -> vector<2x384xf32>
    %216 = arith.addf %215, %61 : vector<2x384xf32>
    %217 = vector.extract_strided_slice %214 {offsets = [0, 0], sizes = [2, 128], strides = [1, 1]} : vector<2x384xf32> to vector<2x128xf32>
    %218 = vector.extract_strided_slice %216 {offsets = [0, 0], sizes = [2, 128], strides = [1, 1]} : vector<2x384xf32> to vector<2x128xf32>
    %219 = arith.addf %217, %218 : vector<2x128xf32>
    %220 = arith.negf %219 : vector<2x128xf32>
    %221 = math.exp %220 : vector<2x128xf32>
    %cst_43 = arith.constant 1.000000e+00 : f32
    %222 = vector.broadcast %cst_43 : f32 to vector<2x128xf32>
    %223 = arith.addf %222, %221 : vector<2x128xf32>
    %224 = arith.divf %222, %223 : vector<2x128xf32>
    %225 = vector.extract_strided_slice %214 {offsets = [0, 128], sizes = [2, 128], strides = [1, 1]} : vector<2x384xf32> to vector<2x128xf32>
    %226 = vector.extract_strided_slice %216 {offsets = [0, 128], sizes = [2, 128], strides = [1, 1]} : vector<2x384xf32> to vector<2x128xf32>
    %227 = arith.addf %225, %226 : vector<2x128xf32>
    %228 = arith.negf %227 : vector<2x128xf32>
    %229 = math.exp %228 : vector<2x128xf32>
    %cst_44 = arith.constant 1.000000e+00 : f32
    %230 = vector.broadcast %cst_44 : f32 to vector<2x128xf32>
    %231 = arith.addf %230, %229 : vector<2x128xf32>
    %232 = arith.divf %230, %231 : vector<2x128xf32>
    %233 = vector.extract_strided_slice %214 {offsets = [0, 256], sizes = [2, 128], strides = [1, 1]} : vector<2x384xf32> to vector<2x128xf32>
    %234 = vector.extract_strided_slice %216 {offsets = [0, 256], sizes = [2, 128], strides = [1, 1]} : vector<2x384xf32> to vector<2x128xf32>
    %235 = arith.mulf %224, %234 : vector<2x128xf32>
    %236 = arith.addf %233, %235 : vector<2x128xf32>
    %237 = math.tanh %236 : vector<2x128xf32>
    %cst_45 = arith.constant 1.000000e+00 : f32
    %238 = vector.broadcast %cst_45 : f32 to vector<2x128xf32>
    %239 = arith.subf %238, %232 : vector<2x128xf32>
    %240 = arith.mulf %239, %237 : vector<2x128xf32>
    %241 = arith.mulf %232, %212 : vector<2x128xf32>
    %242 = arith.addf %240, %241 : vector<2x128xf32>
    %243 = vector.extract_strided_slice %57 {offsets = [6, 0, 0], sizes = [1, 2, 384], strides = [1, 1, 1]} : vector<8x2x384xf32> to vector<1x2x384xf32>
    %244 = vector.shape_cast %243 : vector<1x2x384xf32> to vector<2x384xf32>
    %cst_46 = arith.constant dense<0.000000e+00> : vector<2x384xf32>
    %245 = tpu.matmul %242, %58, %cst_46 {dimension_numbers = #tpu.dot_dimension_numbers<[1], [0], [0], [1], [0, 0, 1, 1], [], []>} : vector<2x128xf32>, vector<128x384xf32>, vector<2x384xf32> -> vector<2x384xf32>
    %246 = arith.addf %245, %61 : vector<2x384xf32>
    %247 = vector.extract_strided_slice %244 {offsets = [0, 0], sizes = [2, 128], strides = [1, 1]} : vector<2x384xf32> to vector<2x128xf32>
    %248 = vector.extract_strided_slice %246 {offsets = [0, 0], sizes = [2, 128], strides = [1, 1]} : vector<2x384xf32> to vector<2x128xf32>
    %249 = arith.addf %247, %248 : vector<2x128xf32>
    %250 = arith.negf %249 : vector<2x128xf32>
    %251 = math.exp %250 : vector<2x128xf32>
    %cst_47 = arith.constant 1.000000e+00 : f32
    %252 = vector.broadcast %cst_47 : f32 to vector<2x128xf32>
    %253 = arith.addf %252, %251 : vector<2x128xf32>
    %254 = arith.divf %252, %253 : vector<2x128xf32>
    %255 = vector.extract_strided_slice %244 {offsets = [0, 128], sizes = [2, 128], strides = [1, 1]} : vector<2x384xf32> to vector<2x128xf32>
    %256 = vector.extract_strided_slice %246 {offsets = [0, 128], sizes = [2, 128], strides = [1, 1]} : vector<2x384xf32> to vector<2x128xf32>
    %257 = arith.addf %255, %256 : vector<2x128xf32>
    %258 = arith.negf %257 : vector<2x128xf32>
    %259 = math.exp %258 : vector<2x128xf32>
    %cst_48 = arith.constant 1.000000e+00 : f32
    %260 = vector.broadcast %cst_48 : f32 to vector<2x128xf32>
    %261 = arith.addf %260, %259 : vector<2x128xf32>
    %262 = arith.divf %260, %261 : vector<2x128xf32>
    %263 = vector.extract_strided_slice %244 {offsets = [0, 256], sizes = [2, 128], strides = [1, 1]} : vector<2x384xf32> to vector<2x128xf32>
    %264 = vector.extract_strided_slice %246 {offsets = [0, 256], sizes = [2, 128], strides = [1, 1]} : vector<2x384xf32> to vector<2x128xf32>
    %265 = arith.mulf %254, %264 : vector<2x128xf32>
    %266 = arith.addf %263, %265 : vector<2x128xf32>
    %267 = math.tanh %266 : vector<2x128xf32>
    %cst_49 = arith.constant 1.000000e+00 : f32
    %268 = vector.broadcast %cst_49 : f32 to vector<2x128xf32>
    %269 = arith.subf %268, %262 : vector<2x128xf32>
    %270 = arith.mulf %269, %267 : vector<2x128xf32>
    %271 = arith.mulf %262, %242 : vector<2x128xf32>
    %272 = arith.addf %270, %271 : vector<2x128xf32>
    %273 = vector.extract_strided_slice %57 {offsets = [7, 0, 0], sizes = [1, 2, 384], strides = [1, 1, 1]} : vector<8x2x384xf32> to vector<1x2x384xf32>
    %274 = vector.shape_cast %273 : vector<1x2x384xf32> to vector<2x384xf32>
    %cst_50 = arith.constant dense<0.000000e+00> : vector<2x384xf32>
    %275 = tpu.matmul %272, %58, %cst_50 {dimension_numbers = #tpu.dot_dimension_numbers<[1], [0], [0], [1], [0, 0, 1, 1], [], []>} : vector<2x128xf32>, vector<128x384xf32>, vector<2x384xf32> -> vector<2x384xf32>
    %276 = arith.addf %275, %61 : vector<2x384xf32>
    %277 = vector.extract_strided_slice %274 {offsets = [0, 0], sizes = [2, 128], strides = [1, 1]} : vector<2x384xf32> to vector<2x128xf32>
    %278 = vector.extract_strided_slice %276 {offsets = [0, 0], sizes = [2, 128], strides = [1, 1]} : vector<2x384xf32> to vector<2x128xf32>
    %279 = arith.addf %277, %278 : vector<2x128xf32>
    %280 = arith.negf %279 : vector<2x128xf32>
    %281 = math.exp %280 : vector<2x128xf32>
    %cst_51 = arith.constant 1.000000e+00 : f32
    %282 = vector.broadcast %cst_51 : f32 to vector<2x128xf32>
    %283 = arith.addf %282, %281 : vector<2x128xf32>
    %284 = arith.divf %282, %283 : vector<2x128xf32>
    %285 = vector.extract_strided_slice %274 {offsets = [0, 128], sizes = [2, 128], strides = [1, 1]} : vector<2x384xf32> to vector<2x128xf32>
    %286 = vector.extract_strided_slice %276 {offsets = [0, 128], sizes = [2, 128], strides = [1, 1]} : vector<2x384xf32> to vector<2x128xf32>
    %287 = arith.addf %285, %286 : vector<2x128xf32>
    %288 = arith.negf %287 : vector<2x128xf32>
    %289 = math.exp %288 : vector<2x128xf32>
    %cst_52 = arith.constant 1.000000e+00 : f32
    %290 = vector.broadcast %cst_52 : f32 to vector<2x128xf32>
    %291 = arith.addf %290, %289 : vector<2x128xf32>
    %292 = arith.divf %290, %291 : vector<2x128xf32>
    %293 = vector.extract_strided_slice %274 {offsets = [0, 256], sizes = [2, 128], strides = [1, 1]} : vector<2x384xf32> to vector<2x128xf32>
    %294 = vector.extract_strided_slice %276 {offsets = [0, 256], sizes = [2, 128], strides = [1, 1]} : vector<2x384xf32> to vector<2x128xf32>
    %295 = arith.mulf %284, %294 : vector<2x128xf32>
    %296 = arith.addf %293, %295 : vector<2x128xf32>
    %297 = math.tanh %296 : vector<2x128xf32>
    %cst_53 = arith.constant 1.000000e+00 : f32
    %298 = vector.broadcast %cst_53 : f32 to vector<2x128xf32>
    %299 = arith.subf %298, %292 : vector<2x128xf32>
    %300 = arith.mulf %299, %297 : vector<2x128xf32>
    %301 = arith.mulf %292, %272 : vector<2x128xf32>
    %302 = arith.addf %300, %301 : vector<2x128xf32>
    %c0_54 = arith.constant 0 : index
    %c0_55 = arith.constant 0 : index
    %303 = vector.load %arg7[%c0_54, %c0_55] : memref<128x16xf32, #tpu.memory_space<vmem>>, vector<128x16xf32>
    %cst_56 = arith.constant dense<0.000000e+00> : vector<2x16xf32>
    %304 = tpu.matmul %302, %303, %cst_56 {dimension_numbers = #tpu.dot_dimension_numbers<[1], [0], [0], [1], [0, 0, 1, 1], [], []>} : vector<2x128xf32>, vector<128x16xf32>, vector<2x16xf32> -> vector<2x16xf32>
    %c0_57 = arith.constant 0 : index
    %c0_58 = arith.constant 0 : index
    %305 = vector.load %arg8[%c0_57, %c0_58] : memref<1x16xf32, #tpu.memory_space<vmem>>, vector<1x16xf32>
    %306 = vector.broadcast %305 : vector<1x16xf32> to vector<2x16xf32>
    %307 = arith.addf %304, %306 : vector<2x16xf32>
    %308 = tpu.concatenate %307, %15 in 1 : vector<2x16xf32>, vector<2x8xf32> -> vector<2x24xf32>
    %309 = vector.shape_cast %308 : vector<2x24xf32> to vector<1x2x24xf32>
    %c0_59 = arith.constant 0 : index
    %c0_60 = arith.constant 0 : index
    %c0_61 = arith.constant 0 : index
    %310 = vector.load %arg10[%c0_59, %c0_60, %c0_61] : memref<1x2x24xf32, #tpu.memory_space<vmem>>, vector<1x2x24xf32>
    tpu.vector_store %arg10[%c0_59, %c0_60, %c0_61], %309 {strides = array<i32>} : memref<1x2x24xf32, #tpu.memory_space<vmem>>, vector<1x2x24xf32>,
    return
  }
}

</mosaic_0001>

<llo_original>
// kernel: tpu_custom_call.1
$region0: #{tpu_custom_call.1}
  #allocation0 [shape = 'u32[]', space=smem, size = 0x4, offset = 0x4, fixed_abs, tag = 'smem constant byte address 0x4 - core index']
  #allocation1 [shape = 'u32[144,128]{1,0:T(1,128)}', space=vmem, size = 0x12000, scoped, tag = 'internal scratch']
  %s0 = inlined_call_operand.vmem [shape: f32[8,2,5], index: 0, kind: input, shape index: {}]
  %s1 = inlined_call_operand.vmem [shape: f32[8,2,1], index: 1, kind: input, shape index: {}]
  %s2 = inlined_call_operand.vmem [shape: f32[4,384], index: 2, kind: input, shape index: {}]
  %s3 = inlined_call_operand.vmem [shape: f32[1,384], index: 3, kind: input, shape index: {}]
  %s4 = inlined_call_operand.hbm [shape: f32[128,384], index: 4, kind: input, shape index: {}]
  %s5 = inlined_call_operand.vmem [shape: f32[1,384], index: 5, kind: input, shape index: {}]
  %s6 = inlined_call_operand.vmem [shape: f32[1,384], index: 6, kind: input, shape index: {}]
  %s7 = inlined_call_operand.vmem [shape: f32[128,16], index: 7, kind: input, shape index: {}]
  %s8 = inlined_call_operand.vmem [shape: f32[1,16], index: 8, kind: input, shape index: {}]
  %s9 = inlined_call_operand.vmem [shape: f32[10,8], index: 9, kind: input, shape index: {}]
  %s10 = inlined_call_operand.hbm [shape: f32[1,2,24], index: 10, kind: output, shape index: {}]
  %s11 = sld [smem:[#allocation0]]
  $region54: #{tpu_custom_call.1} parent=0
    _
  %s13 = ssub.s32 1, %s11
  %s14 = scalar_select 0, %s13, %s11
  $region1: #{tpu_custom_call.1} parent=0
    #allocation2 [shape = 'u8[196608]{0}', space=vmem, size = 0x30000, scoped, tag = 'input window, operand 4, single buffered']
    #allocation3 [shape = 's32[1]{0}', space=sflag, size = 0x4, scoped, tag = 'scoped memory for tpu_custom_call.1']
    #allocation4 [shape = 's32[1]{0}', space=sflag, size = 0x4, scoped, tag = 'scoped memory for tpu_custom_call.1']
    #allocation5 [shape = 'u8[1024]{0}', space=vmem, size = 0x400, scoped, tag = 'output window, operand 0, single buffered']
    %15 = vsyncpa [#allocation3], 0
    %16 = vsyncpa [#allocation4], 0
    // Predicated region
    $region2: #{tpu_custom_call.1} parent=1 // pred_check
      _
    $region3: #{tpu_custom_call.1} parent=1 // pred_check_branch
      %18 = sbr.rel (0) target = $region5
    $region4: #{tpu_custom_call.1} parent=1 // pred_region
      _
    $region5: #{tpu_custom_call.1} parent=1 // pred_fallthru
      _
    // Predicated region
    $region6: #{tpu_custom_call.1} parent=1 // pred_check
      _
    $region7: #{tpu_custom_call.1} parent=1 // pred_check_branch
      %20 = sbr.rel (0) target = $region9
    $region8: #{tpu_custom_call.1} parent=1 // pred_region
      _
    $region9: #{tpu_custom_call.1} parent=1 // pred_fallthru
      _
    // Predicated region
    $region10: #{tpu_custom_call.1} parent=1 // pred_check
      _
    $region11: #{tpu_custom_call.1} parent=1 // pred_check_branch
      %22 = sbr.rel (0) target = $region13
    $region12: #{tpu_custom_call.1} parent=1 // pred_region
      _
    $region13: #{tpu_custom_call.1} parent=1 // pred_fallthru
      _
    // Predicated region
    $region14: #{tpu_custom_call.1} parent=1 // pred_check
      _
    $region15: #{tpu_custom_call.1} parent=1 // pred_check_branch
      %24 = sbr.rel (0) target = $region17
    $region16: #{tpu_custom_call.1} parent=1 // pred_region
      _
    $region17: #{tpu_custom_call.1} parent=1 // pred_fallthru
      _
    // Predicated region
    $region18: #{tpu_custom_call.1} parent=1 // pred_check
      _
    $region19: #{tpu_custom_call.1} parent=1 // pred_check_branch
      %26 = sbr.rel (0) target = $region21
    $region20: #{tpu_custom_call.1} parent=1 // pred_region
      %s28 = ssub.s32 6144, 6144
      %29 = vsyncadd [#allocation3], %s28
      %s30 = sshll.u32 [#allocation2], 4
      %s31 = int_to_ptr.vmem [resolvable:$true] %s30
      %36 = dma.hbm_to_vmem [thread:$0]  %s4, 6144, %s31, [#allocation3], 384, 384, 24
    $region21: #{tpu_custom_call.1} parent=1 // pred_fallthru
      _
    // Predicated region
    $region22: #{tpu_custom_call.1} parent=1 // pred_check
      _
    $region23: #{tpu_custom_call.1} parent=1 // pred_check_branch
      %38 = sbr.rel (0) target = $region25
    $region24: #{tpu_custom_call.1} parent=1 // pred_region
      _
    $region25: #{tpu_custom_call.1} parent=1 // pred_fallthru
      _
    // Predicated region
    $region26: #{tpu_custom_call.1} parent=1 // pred_check
      _
    $region27: #{tpu_custom_call.1} parent=1 // pred_check_branch
      %40 = sbr.rel (0) target = $region29
    $region28: #{tpu_custom_call.1} parent=1 // pred_region
      _
    $region29: #{tpu_custom_call.1} parent=1 // pred_fallthru
      _
    // Predicated region
    $region30: #{tpu_custom_call.1} parent=1 // pred_check
      _
    $region31: #{tpu_custom_call.1} parent=1 // pred_check_branch
      %42 = sbr.rel (0) target = $region33
    $region32: #{tpu_custom_call.1} parent=1 // pred_region
      _
    $region33: #{tpu_custom_call.1} parent=1 // pred_fallthru
      _
    // Predicated region
    $region34: #{tpu_custom_call.1} parent=1 // pred_check
      _
    $region35: #{tpu_custom_call.1} parent=1 // pred_check_branch
      %44 = sbr.rel (0) target = $region37
    $region36: #{tpu_custom_call.1} parent=1 // pred_region
      _
    $region37: #{tpu_custom_call.1} parent=1 // pred_fallthru
      _
    // Predicated region
    $region38: #{tpu_custom_call.1} parent=1 // pred_check
      _
    $region39: #{tpu_custom_call.1} parent=1 // pred_check_branch
      %46 = sbr.rel (0) target = $region41
    $region40: #{tpu_custom_call.1} parent=1 // pred_region
      _
    $region41: #{tpu_custom_call.1} parent=1 // pred_fallthru
      _
    // Predicated region
    $region42: #{tpu_custom_call.1} parent=1 // pred_check
      _
    $region43: #{tpu_custom_call.1} parent=1 // pred_check_branch
      %48 = sbr.rel (0) target = $region45
    $region44: #{tpu_custom_call.1} parent=1 // pred_region
      %49 = dma.done [#allocation3], 6144
    $region45: #{tpu_custom_call.1} parent=1 // pred_fallthru
      _
    %v50 = vld [vmem:[%s0] sm:$0x3]
    %v51 = vld [vmem:[%s0 + $0x2] sm:$0x3]
    %v52 = vld [vmem:[%s0 + $0x4] sm:$0x3]
    %v53 = vld [vmem:[%s0 + $0x6] sm:$0x3]
    %v54 = vld [vmem:[%s0 + $0x8] sm:$0x3]
    %v55 = vld [vmem:[%s0 + $0xa] sm:$0x3]
    %v56 = vld [vmem:[%s0 + $0xc] sm:$0x3]
    %v57 = vld [vmem:[%s0 + $0xe] sm:$0x3]
    %v58 = vld [vmem:[%s1] sm:$0x3]
    %v59 = vld [vmem:[%s1 + $0x2] sm:$0x3]
    %v60 = vld [vmem:[%s1 + $0x4] sm:$0x3]
    %v61 = vld [vmem:[%s1 + $0x6] sm:$0x3]
    %v62 = vld [vmem:[%s1 + $0x8] sm:$0x3]
    %v63 = vld [vmem:[%s1 + $0xa] sm:$0x3]
    %v64 = vld [vmem:[%s1 + $0xc] sm:$0x3]
    %v65 = vld [vmem:[%s1 + $0xe] sm:$0x3]
    %v66 = vcvt.f32.s32.to.zero.pseudo %v50
    %vm67 = vcmp.gt.s32.totalorder %v66, 0
    %v68 = vsel %vm67, %v66, 0
    %vm69 = vcmp.lt.s32.totalorder %v68, 9
    %v70 = vsel %vm69, %v68, 9
    %v71 = vlaneseq
    %v72 = vand.u32 %v71, 127
    %73 = vset.pattern.permute.xlu0 4
    %74 = vperm.xlu0 %73, %v70
    %v75 = vpop.permute.xlu0 %74
    %vm76 = vcmp.eq.s32.totalorder %v72, %v75
    %v77 = vsel %vm76, 1, 0
    %v78 = vcvt.s32.f32 %v77
    %v79 = vld [vmem:[%s9] sm:$0xff]
    %v80 = vld [vmem:[%s9 + $0x8] sm:$0x3]
    %vm81 = vcmask 80896
    %v83 = vsel %vm81, %v78, 0
    %vm85 = vcmask 1041408
    %v87 = vsel %vm85, %v80, 0
    %89 = vmatprep.subr.mxu0 0.0
    %90 = vmatpush1.msra.mxu0 %v79
    %91 = vmatprep.subr.mxu0 0.0
    %92 = vmatpush1.msra.mxu0 %v87
    %93 = vmatprep.subr.mxu0 0.0
    %94 = vmatpush1.msra.mxu0 0.0
    %95 = vmatprep.subr.mxu0 0.0
    %96 = vmatpush1.msra.mxu0 0.0
    %97 = vmatprep.subr.mxu0 0.0
    %98 = vmatpush1.msra.mxu0 0.0
    %99 = vmatprep.subr.mxu0 0.0
    %100 = vmatpush1.msra.mxu0 0.0
    %101 = vmatprep.subr.mxu0 0.0
    %102 = vmatpush1.msra.mxu0 0.0
    %103 = vmatprep.subr.mxu0 0.0
    %104 = vmatpush1.msra.mxu0 0.0
    %105 = vmatprep.subr.mxu0 0.0
    %106 = vmatpush1.msra.mxu0 0.0
    %107 = vmatprep.subr.mxu0 0.0
    %108 = vmatpush1.msra.mxu0 0.0
    %109 = vmatprep.subr.mxu0 0.0
    %110 = vmatpush1.msra.mxu0 0.0
    %111 = vmatprep.subr.mxu0 0.0
    %112 = vmatpush1.msra.mxu0 0.0
    %113 = vmatprep.subr.mxu0 0.0
    %114 = vmatpush1.msra.mxu0 0.0
    %115 = vmatprep.subr.mxu0 0.0
    %116 = vmatpush1.msra.mxu0 0.0
    %117 = vmatprep.subr.mxu0 0.0
    %118 = vmatpush1.msra.mxu0 0.0
    %119 = vmatprep.subr.mxu0 0.0
    %120 = vmatpush1.msra.mxu0 0.0
    %121 = vmatprep.subr.mxu0 0.0
    %122 = vmatpush1.msra.mxu0 0.0
    %123 = vmatprep.subr.mxu0 0.0
    %124 = vmatpush1.msra.mxu0 0.0
    %125 = vmatprep.subr.mxu0 0.0
    %126 = vmatpush1.msra.mxu0 0.0
    %127 = vmatprep.subr.mxu0 0.0
    %128 = vmatpush1.msra.mxu0 0.0
    %129 = vmatprep.subr.mxu0 0.0
    %130 = vmatpush1.msra.mxu0 0.0
    %131 = vmatprep.subr.mxu0 0.0
    %132 = vmatpush1.msra.mxu0 0.0
    %133 = vmatprep.subr.mxu0 0.0
    %134 = vmatpush1.msra.mxu0 0.0
    %135 = vmatprep.subr.mxu0 0.0
    %136 = vmatpush1.msra.mxu0 0.0
    %137 = vmatprep.subr.mxu0 0.0
    %138 = vmatpush1.msra.mxu0 0.0
    %139 = vmatprep.subr.mxu0 0.0
    %140 = vmatpush1.msra.mxu0 0.0
    %141 = vmatprep.subr.mxu0 0.0
    %142 = vmatpush1.msra.mxu0 0.0
    %143 = vmatprep.subr.mxu0 0.0
    %144 = vmatpush1.msra.mxu0 0.0
    %145 = vmatprep.subr.mxu0 0.0
    %146 = vmatpush1.msra.mxu0 0.0
    %147 = vmatprep.subr.mxu0 0.0
    %148 = vmatpush1.msra.mxu0 0.0
    %149 = vmatprep.subr.mxu0 0.0
    %150 = vmatpush1.msra.mxu0 0.0
    %151 = vmatprep.subr.mxu0 0.0
    %152 = vmatpush1.msra.mxu0 0.0
    %153 = vmatprep.mubr.f32.mxu0 0.0
    %154 = vmatmul.mubr.f32.gmra.mrb[0].mxu0 %v83
    %v155 = vpop.f32.mrb[0].mxu0
    %v156 = vadd.f32 0.0, %v155
    %v157 = vpop.f32.mrb[0].mxu0
    %158 = vdwg.mxu0
    %v159 = vsub.f32 %v59, %v58
    %v160 = vsub.f32 %v60, %v59
    %v161 = vsub.f32 %v61, %v60
    %v162 = vsub.f32 %v62, %v61
    %v163 = vsub.f32 %v63, %v62
    %v164 = vsub.f32 %v64, %v63
    %v165 = vsub.f32 %v65, %v64
    %v166 = vld [vmem:[%s3] sm:$0x7]
    %168 = vset.pattern.permute.xlu0 0
    %169 = vperm.xlu0 %168, 1.0
    %v170 = vpop.permute.xlu0 %169
    %173 = vset.pattern.permute.xlu0 0
    %174 = vperm.xlu0 %173, %v159
    %v175 = vpop.permute.xlu0 %174
    %178 = vset.pattern.permute.xlu0 0
    %179 = vperm.xlu0 %178, %v160
    %v180 = vpop.permute.xlu0 %179
    %183 = vset.pattern.permute.xlu0 0
    %184 = vperm.xlu0 %183, %v161
    %v185 = vpop.permute.xlu0 %184
    %188 = vset.pattern.permute.xlu0 0
    %189 = vperm.xlu0 %188, %v162
    %v190 = vpop.permute.xlu0 %189
    %193 = vset.pattern.permute.xlu0 0
    %194 = vperm.xlu0 %193, %v163
    %v195 = vpop.permute.xlu0 %194
    %198 = vset.pattern.permute.xlu0 0
    %199 = vperm.xlu0 %198, %v164
    %v200 = vpop.permute.xlu0 %199
    %203 = vset.pattern.permute.xlu0 0
    %204 = vperm.xlu0 %203, %v165
    %v205 = vpop.permute.xlu0 %204
    %v208 = vlaneseq
    %v209 = vshrl.u32 %v208, 7
    %v210 = vsub.s32 0, %v209
    %v211 = vrot.slane %v166, %v210
    %v212 = vlaneseq
    %v213 = vshrl.u32 %v212, 7
    %v214 = vsub.s32 1, %v213
    %v215 = vrot.slane %v166, %v214
    %v216 = vlaneseq
    %v217 = vshrl.u32 %v216, 7
    %v218 = vsub.s32 2, %v217
    %v219 = vrot.slane %v166, %v218
    %v223 = vmul.f32 %v170, %v211
    %v224 = vmul.f32 %v170, %v215
    %v225 = vmul.f32 %v170, %v219
    %v226 = vmul.f32 %v175, %v211
    %v227 = vmul.f32 %v175, %v215
    %v228 = vmul.f32 %v175, %v219
    %v229 = vmul.f32 %v180, %v211
    %v230 = vmul.f32 %v180, %v215
    %v231 = vmul.f32 %v180, %v219
    %v232 = vmul.f32 %v185, %v211
    %v233 = vmul.f32 %v185, %v215
    %v234 = vmul.f32 %v185, %v219
    %v235 = vmul.f32 %v190, %v211
    %v236 = vmul.f32 %v190, %v215
    %v237 = vmul.f32 %v190, %v219
    %v238 = vmul.f32 %v195, %v211
    %v239 = vmul.f32 %v195, %v215
    %v240 = vmul.f32 %v195, %v219
    %v241 = vmul.f32 %v200, %v211
    %v242 = vmul.f32 %v200, %v215
    %v243 = vmul.f32 %v200, %v219
    %v244 = vmul.f32 %v205, %v211
    %v245 = vmul.f32 %v205, %v215
    %v246 = vmul.f32 %v205, %v219
    %v247 = vld [vmem:[%s5] sm:$0x7]
    %v249 = vlaneseq
    %v250 = vshrl.u32 %v249, 7
    %v251 = vsub.s32 0, %v250
    %v252 = vrot.slane %v247, %v251
    %v253 = vlaneseq
    %v254 = vshrl.u32 %v253, 7
    %v255 = vsub.s32 1, %v254
    %v256 = vrot.slane %v247, %v255
    %v257 = vlaneseq
    %v258 = vshrl.u32 %v257, 7
    %v259 = vsub.s32 2, %v258
    %v260 = vrot.slane %v247, %v259
    %v264 = vadd.f32 %v223, %v252
    %v265 = vadd.f32 %v224, %v256
    %v266 = vadd.f32 %v225, %v260
    %v267 = vadd.f32 %v226, %v252
    %v268 = vadd.f32 %v227, %v256
    %v269 = vadd.f32 %v228, %v260
    %v270 = vadd.f32 %v229, %v252
    %v271 = vadd.f32 %v230, %v256
    %v272 = vadd.f32 %v231, %v260
    %v273 = vadd.f32 %v232, %v252
    %v274 = vadd.f32 %v233, %v256
    %v275 = vadd.f32 %v234, %v260
    %v276 = vadd.f32 %v235, %v252
    %v277 = vadd.f32 %v236, %v256
    %v278 = vadd.f32 %v237, %v260
    %v279 = vadd.f32 %v238, %v252
    %v280 = vadd.f32 %v239, %v256
    %v281 = vadd.f32 %v240, %v260
    %v282 = vadd.f32 %v241, %v252
    %v283 = vadd.f32 %v242, %v256
    %v284 = vadd.f32 %v243, %v260
    %v285 = vadd.f32 %v244, %v252
    %v286 = vadd.f32 %v245, %v256
    %v287 = vadd.f32 %v246, %v260
    %v288 = vld [vmem:[%s2] ss:$4 sm:$0x7]
    %290 = vset.pattern.permute.xlu0 0
    %291 = vperm.xlu0 %290, %v50
    %v292 = vpop.permute.xlu0 %291
    %295 = vset.pattern.permute.xlu0 0
    %296 = vperm.xlu0 %295, %v51
    %v297 = vpop.permute.xlu0 %296
    %300 = vset.pattern.permute.xlu0 0
    %301 = vperm.xlu0 %300, %v52
    %v302 = vpop.permute.xlu0 %301
    %305 = vset.pattern.permute.xlu0 0
    %306 = vperm.xlu0 %305, %v53
    %v307 = vpop.permute.xlu0 %306
    %310 = vset.pattern.permute.xlu0 0
    %311 = vperm.xlu0 %310, %v54
    %v312 = vpop.permute.xlu0 %311
    %315 = vset.pattern.permute.xlu0 0
    %316 = vperm.xlu0 %315, %v55
    %v317 = vpop.permute.xlu0 %316
    %320 = vset.pattern.permute.xlu0 0
    %321 = vperm.xlu0 %320, %v56
    %v322 = vpop.permute.xlu0 %321
    %325 = vset.pattern.permute.xlu0 0
    %326 = vperm.xlu0 %325, %v57
    %v327 = vpop.permute.xlu0 %326
    %v330 = vlaneseq
    %v331 = vshrl.u32 %v330, 7
    %v332 = vsub.s32 0, %v331
    %v333 = vrot.slane %v288, %v332
    %v334 = vlaneseq
    %v335 = vshrl.u32 %v334, 7
    %v336 = vsub.s32 1, %v335
    %v337 = vrot.slane %v288, %v336
    %v338 = vlaneseq
    %v339 = vshrl.u32 %v338, 7
    %v340 = vsub.s32 2, %v339
    %v341 = vrot.slane %v288, %v340
    %v345 = vmul.f32 %v292, %v333
    %v346 = vmul.f32 %v292, %v337
    %v347 = vmul.f32 %v292, %v341
    %v348 = vmul.f32 %v297, %v333
    %v349 = vmul.f32 %v297, %v337
    %v350 = vmul.f32 %v297, %v341
    %v351 = vmul.f32 %v302, %v333
    %v352 = vmul.f32 %v302, %v337
    %v353 = vmul.f32 %v302, %v341
    %v354 = vmul.f32 %v307, %v333
    %v355 = vmul.f32 %v307, %v337
    %v356 = vmul.f32 %v307, %v341
    %v357 = vmul.f32 %v312, %v333
    %v358 = vmul.f32 %v312, %v337
    %v359 = vmul.f32 %v312, %v341
    %v360 = vmul.f32 %v317, %v333
    %v361 = vmul.f32 %v317, %v337
    %v362 = vmul.f32 %v317, %v341
    %v363 = vmul.f32 %v322, %v333
    %v364 = vmul.f32 %v322, %v337
    %v365 = vmul.f32 %v322, %v341
    %v366 = vmul.f32 %v327, %v333
    %v367 = vmul.f32 %v327, %v337
    %v368 = vmul.f32 %v327, %v341
    %v369 = vadd.f32 %v264, %v345
    %v370 = vadd.f32 %v265, %v346
    %v371 = vadd.f32 %v266, %v347
    %v372 = vadd.f32 %v267, %v348
    %v373 = vadd.f32 %v268, %v349
    %v374 = vadd.f32 %v269, %v350
    %v375 = vadd.f32 %v270, %v351
    %v376 = vadd.f32 %v271, %v352
    %v377 = vadd.f32 %v272, %v353
    %v378 = vadd.f32 %v273, %v354
    %v379 = vadd.f32 %v274, %v355
    %v380 = vadd.f32 %v275, %v356
    %v381 = vadd.f32 %v276, %v357
    %v382 = vadd.f32 %v277, %v358
    %v383 = vadd.f32 %v278, %v359
    %v384 = vadd.f32 %v279, %v360
    %v385 = vadd.f32 %v280, %v361
    %v386 = vadd.f32 %v281, %v362
    %v387 = vadd.f32 %v282, %v363
    %v388 = vadd.f32 %v283, %v364
    %v389 = vadd.f32 %v284, %v365
    %v390 = vadd.f32 %v285, %v366
    %v391 = vadd.f32 %v286, %v367
    %v392 = vadd.f32 %v287, %v368
    %s393 = scalar_lea.vmem %s2, 1
    %v394 = vld [vmem:[%s393] ss:$4 sm:$0x7]
    %395 = vset.pattern.permute.xlu0 1
    %396 = vperm.xlu0 %395, %v50
    %v397 = vpop.permute.xlu0 %396
    %399 = vset.pattern.permute.xlu0 1
    %400 = vperm.xlu0 %399, %v51
    %v401 = vpop.permute.xlu0 %400
    %403 = vset.pattern.permute.xlu0 1
    %404 = vperm.xlu0 %403, %v52
    %v405 = vpop.permute.xlu0 %404
    %407 = vset.pattern.permute.xlu0 1
    %408 = vperm.xlu0 %407, %v53
    %v409 = vpop.permute.xlu0 %408
    %411 = vset.pattern.permute.xlu0 1
    %412 = vperm.xlu0 %411, %v54
    %v413 = vpop.permute.xlu0 %412
    %415 = vset.pattern.permute.xlu0 1
    %416 = vperm.xlu0 %415, %v55
    %v417 = vpop.permute.xlu0 %416
    %419 = vset.pattern.permute.xlu0 1
    %420 = vperm.xlu0 %419, %v56
    %v421 = vpop.permute.xlu0 %420
    %423 = vset.pattern.permute.xlu0 1
    %424 = vperm.xlu0 %423, %v57
    %v425 = vpop.permute.xlu0 %424
    %v428 = vlaneseq
    %v429 = vshrl.u32 %v428, 7
    %v430 = vsub.s32 0, %v429
    %v431 = vrot.slane %v394, %v430
    %v432 = vlaneseq
    %v433 = vshrl.u32 %v432, 7
    %v434 = vsub.s32 1, %v433
    %v435 = vrot.slane %v394, %v434
    %v436 = vlaneseq
    %v437 = vshrl.u32 %v436, 7
    %v438 = vsub.s32 2, %v437
    %v439 = vrot.slane %v394, %v438
    %v443 = vmul.f32 %v397, %v431
    %v444 = vmul.f32 %v397, %v435
    %v445 = vmul.f32 %v397, %v439
    %v446 = vmul.f32 %v401, %v431
    %v447 = vmul.f32 %v401, %v435
    %v448 = vmul.f32 %v401, %v439
    %v449 = vmul.f32 %v405, %v431
    %v450 = vmul.f32 %v405, %v435
    %v451 = vmul.f32 %v405, %v439
    %v452 = vmul.f32 %v409, %v431
    %v453 = vmul.f32 %v409, %v435
    %v454 = vmul.f32 %v409, %v439
    %v455 = vmul.f32 %v413, %v431
    %v456 = vmul.f32 %v413, %v435
    %v457 = vmul.f32 %v413, %v439
    %v458 = vmul.f32 %v417, %v431
    %v459 = vmul.f32 %v417, %v435
    %v460 = vmul.f32 %v417, %v439
    %v461 = vmul.f32 %v421, %v431
    %v462 = vmul.f32 %v421, %v435
    %v463 = vmul.f32 %v421, %v439
    %v464 = vmul.f32 %v425, %v431
    %v465 = vmul.f32 %v425, %v435
    %v466 = vmul.f32 %v425, %v439
    %v467 = vadd.f32 %v369, %v443
    %v468 = vadd.f32 %v370, %v444
    %v469 = vadd.f32 %v371, %v445
    %v470 = vadd.f32 %v372, %v446
    %v471 = vadd.f32 %v373, %v447
    %v472 = vadd.f32 %v374, %v448
    %v473 = vadd.f32 %v375, %v449
    %v474 = vadd.f32 %v376, %v450
    %v475 = vadd.f32 %v377, %v451
    %v476 = vadd.f32 %v378, %v452
    %v477 = vadd.f32 %v379, %v453
    %v478 = vadd.f32 %v380, %v454
    %v479 = vadd.f32 %v381, %v455
    %v480 = vadd.f32 %v382, %v456
    %v481 = vadd.f32 %v383, %v457
    %v482 = vadd.f32 %v384, %v458
    %v483 = vadd.f32 %v385, %v459
    %v484 = vadd.f32 %v386, %v460
    %v485 = vadd.f32 %v387, %v461
    %v486 = vadd.f32 %v388, %v462
    %v487 = vadd.f32 %v389, %v463
    %v488 = vadd.f32 %v390, %v464
    %v489 = vadd.f32 %v391, %v465
    %v490 = vadd.f32 %v392, %v466
    %s491 = scalar_lea.vmem %s2, 2
    %v492 = vld [vmem:[%s491] ss:$4 sm:$0x7]
    %493 = vset.pattern.permute.xlu0 2
    %494 = vperm.xlu0 %493, %v50
    %v495 = vpop.permute.xlu0 %494
    %497 = vset.pattern.permute.xlu0 2
    %498 = vperm.xlu0 %497, %v51
    %v499 = vpop.permute.xlu0 %498
    %501 = vset.pattern.permute.xlu0 2
    %502 = vperm.xlu0 %501, %v52
    %v503 = vpop.permute.xlu0 %502
    %505 = vset.pattern.permute.xlu0 2
    %506 = vperm.xlu0 %505, %v53
    %v507 = vpop.permute.xlu0 %506
    %509 = vset.pattern.permute.xlu0 2
    %510 = vperm.xlu0 %509, %v54
    %v511 = vpop.permute.xlu0 %510
    %513 = vset.pattern.permute.xlu0 2
    %514 = vperm.xlu0 %513, %v55
    %v515 = vpop.permute.xlu0 %514
    %517 = vset.pattern.permute.xlu0 2
    %518 = vperm.xlu0 %517, %v56
    %v519 = vpop.permute.xlu0 %518
    %521 = vset.pattern.permute.xlu0 2
    %522 = vperm.xlu0 %521, %v57
    %v523 = vpop.permute.xlu0 %522
    %v526 = vlaneseq
    %v527 = vshrl.u32 %v526, 7
    %v528 = vsub.s32 0, %v527
    %v529 = vrot.slane %v492, %v528
    %v530 = vlaneseq
    %v531 = vshrl.u32 %v530, 7
    %v532 = vsub.s32 1, %v531
    %v533 = vrot.slane %v492, %v532
    %v534 = vlaneseq
    %v535 = vshrl.u32 %v534, 7
    %v536 = vsub.s32 2, %v535
    %v537 = vrot.slane %v492, %v536
    %v541 = vmul.f32 %v495, %v529
    %v542 = vmul.f32 %v495, %v533
    %v543 = vmul.f32 %v495, %v537
    %v544 = vmul.f32 %v499, %v529
    %v545 = vmul.f32 %v499, %v533
    %v546 = vmul.f32 %v499, %v537
    %v547 = vmul.f32 %v503, %v529
    %v548 = vmul.f32 %v503, %v533
    %v549 = vmul.f32 %v503, %v537
    %v550 = vmul.f32 %v507, %v529
    %v551 = vmul.f32 %v507, %v533
    %v552 = vmul.f32 %v507, %v537
    %v553 = vmul.f32 %v511, %v529
    %v554 = vmul.f32 %v511, %v533
    %v555 = vmul.f32 %v511, %v537
    %v556 = vmul.f32 %v515, %v529
    %v557 = vmul.f32 %v515, %v533
    %v558 = vmul.f32 %v515, %v537
    %v559 = vmul.f32 %v519, %v529
    %v560 = vmul.f32 %v519, %v533
    %v561 = vmul.f32 %v519, %v537
    %v562 = vmul.f32 %v523, %v529
    %v563 = vmul.f32 %v523, %v533
    %v564 = vmul.f32 %v523, %v537
    %v565 = vadd.f32 %v467, %v541
    %v566 = vadd.f32 %v468, %v542
    %v567 = vadd.f32 %v469, %v543
    %v568 = vadd.f32 %v470, %v544
    %v569 = vadd.f32 %v471, %v545
    %v570 = vadd.f32 %v472, %v546
    %v571 = vadd.f32 %v473, %v547
    %v572 = vadd.f32 %v474, %v548
    %v573 = vadd.f32 %v475, %v549
    %v574 = vadd.f32 %v476, %v550
    %v575 = vadd.f32 %v477, %v551
    %v576 = vadd.f32 %v478, %v552
    %v577 = vadd.f32 %v479, %v553
    %v578 = vadd.f32 %v480, %v554
    %v579 = vadd.f32 %v481, %v555
    %v580 = vadd.f32 %v482, %v556
    %v581 = vadd.f32 %v483, %v557
    %v582 = vadd.f32 %v484, %v558
    %v583 = vadd.f32 %v485, %v559
    %v584 = vadd.f32 %v486, %v560
    %v585 = vadd.f32 %v487, %v561
    %v586 = vadd.f32 %v488, %v562
    %v587 = vadd.f32 %v489, %v563
    %v588 = vadd.f32 %v490, %v564
    %s589 = scalar_lea.vmem %s2, 3
    %v590 = vld [vmem:[%s589] ss:$4 sm:$0x7]
    %591 = vset.pattern.permute.xlu0 3
    %592 = vperm.xlu0 %591, %v50
    %v593 = vpop.permute.xlu0 %592
    %595 = vset.pattern.permute.xlu0 3
    %596 = vperm.xlu0 %595, %v51
    %v597 = vpop.permute.xlu0 %596
    %599 = vset.pattern.permute.xlu0 3
    %600 = vperm.xlu0 %599, %v52
    %v601 = vpop.permute.xlu0 %600
    %603 = vset.pattern.permute.xlu0 3
    %604 = vperm.xlu0 %603, %v53
    %v605 = vpop.permute.xlu0 %604
    %607 = vset.pattern.permute.xlu0 3
    %608 = vperm.xlu0 %607, %v54
    %v609 = vpop.permute.xlu0 %608
    %611 = vset.pattern.permute.xlu0 3
    %612 = vperm.xlu0 %611, %v55
    %v613 = vpop.permute.xlu0 %612
    %615 = vset.pattern.permute.xlu0 3
    %616 = vperm.xlu0 %615, %v56
    %v617 = vpop.permute.xlu0 %616
    %619 = vset.pattern.permute.xlu0 3
    %620 = vperm.xlu0 %619, %v57
    %v621 = vpop.permute.xlu0 %620
    %v624 = vlaneseq
    %v625 = vshrl.u32 %v624, 7
    %v626 = vsub.s32 0, %v625
    %v627 = vrot.slane %v590, %v626
    %v628 = vlaneseq
    %v629 = vshrl.u32 %v628, 7
    %v630 = vsub.s32 1, %v629
    %v631 = vrot.slane %v590, %v630
    %v632 = vlaneseq
    %v633 = vshrl.u32 %v632, 7
    %v634 = vsub.s32 2, %v633
    %v635 = vrot.slane %v590, %v634
    %v639 = vmul.f32 %v593, %v627
    %v640 = vmul.f32 %v593, %v631
    %v641 = vmul.f32 %v593, %v635
    %v642 = vmul.f32 %v597, %v627
    %v643 = vmul.f32 %v597, %v631
    %v644 = vmul.f32 %v597, %v635
    %v645 = vmul.f32 %v601, %v627
    %v646 = vmul.f32 %v601, %v631
    %v647 = vmul.f32 %v601, %v635
    %v648 = vmul.f32 %v605, %v627
    %v649 = vmul.f32 %v605, %v631
    %v650 = vmul.f32 %v605, %v635
    %v651 = vmul.f32 %v609, %v627
    %v652 = vmul.f32 %v609, %v631
    %v653 = vmul.f32 %v609, %v635
    %v654 = vmul.f32 %v613, %v627
    %v655 = vmul.f32 %v613, %v631
    %v656 = vmul.f32 %v613, %v635
    %v657 = vmul.f32 %v617, %v627
    %v658 = vmul.f32 %v617, %v631
    %v659 = vmul.f32 %v617, %v635
    %v660 = vmul.f32 %v621, %v627
    %v661 = vmul.f32 %v621, %v631
    %v662 = vmul.f32 %v621, %v635
    %v663 = vadd.f32 %v565, %v639
    %v664 = vadd.f32 %v566, %v640
    %v665 = vadd.f32 %v567, %v641
    %v666 = vadd.f32 %v568, %v642
    %v667 = vadd.f32 %v569, %v643
    %v668 = vadd.f32 %v570, %v644
    %v669 = vadd.f32 %v571, %v645
    %v670 = vadd.f32 %v572, %v646
    %v671 = vadd.f32 %v573, %v647
    %v672 = vadd.f32 %v574, %v648
    %v673 = vadd.f32 %v575, %v649
    %v674 = vadd.f32 %v576, %v650
    %v675 = vadd.f32 %v577, %v651
    %v676 = vadd.f32 %v578, %v652
    %v677 = vadd.f32 %v579, %v653
    %v678 = vadd.f32 %v580, %v654
    %v679 = vadd.f32 %v581, %v655
    %v680 = vadd.f32 %v582, %v656
    %v681 = vadd.f32 %v583, %v657
    %v682 = vadd.f32 %v584, %v658
    %v683 = vadd.f32 %v585, %v659
    %v684 = vadd.f32 %v586, %v660
    %v685 = vadd.f32 %v587, %v661
    %v686 = vadd.f32 %v588, %v662
    %v687 = vld [vmem:[#allocation2] sm:$0xff]
    %v688 = vld [vmem:[#allocation2 + $0x8] sm:$0xff]
    %v689 = vld [vmem:[#allocation2 + $0x10] sm:$0xff]
    %v690 = vld [vmem:[#allocation2 + $0x18] sm:$0xff]
    %v691 = vld [vmem:[#allocation2 + $0x20] sm:$0xff]
    %v692 = vld [vmem:[#allocation2 + $0x28] sm:$0xff]
    %v693 = vld [vmem:[#allocation2 + $0x30] sm:$0xff]
    %v694 = vld [vmem:[#allocation2 + $0x38] sm:$0xff]
    %v695 = vld [vmem:[#allocation2 + $0x40] sm:$0xff]
    %v696 = vld [vmem:[#allocation2 + $0x48] sm:$0xff]
    %v697 = vld [vmem:[#allocation2 + $0x50] sm:$0xff]
    %v698 = vld [vmem:[#allocation2 + $0x58] sm:$0xff]
    %v699 = vld [vmem:[#allocation2 + $0x60] sm:$0xff]
    %v700 = vld [vmem:[#allocation2 + $0x68] sm:$0xff]
    %v701 = vld [vmem:[#allocation2 + $0x70] sm:$0xff]
    %v702 = vld [vmem:[#allocation2 + $0x78] sm:$0xff]
    %v703 = vld [vmem:[#allocation2 + $0x80] sm:$0xff]
    %v704 = vld [vmem:[#allocation2 + $0x88] sm:$0xff]
    %v705 = vld [vmem:[#allocation2 + $0x90] sm:$0xff]
    %v706 = vld [vmem:[#allocation2 + $0x98] sm:$0xff]
    %v707 = vld [vmem:[#allocation2 + $0xa0] sm:$0xff]
    %v708 = vld [vmem:[#allocation2 + $0xa8] sm:$0xff]
    %v709 = vld [vmem:[#allocation2 + $0xb0] sm:$0xff]
    %v710 = vld [vmem:[#allocation2 + $0xb8] sm:$0xff]
    %v711 = vld [vmem:[#allocation2 + $0xc0] sm:$0xff]
    %v712 = vld [vmem:[#allocation2 + $0xc8] sm:$0xff]
    %v713 = vld [vmem:[#allocation2 + $0xd0] sm:$0xff]
    %v714 = vld [vmem:[#allocation2 + $0xd8] sm:$0xff]
    %v715 = vld [vmem:[#allocation2 + $0xe0] sm:$0xff]
    %v716 = vld [vmem:[#allocation2 + $0xe8] sm:$0xff]
    %v717 = vld [vmem:[#allocation2 + $0xf0] sm:$0xff]
    %v718 = vld [vmem:[#allocation2 + $0xf8] sm:$0xff]
    %v719 = vld [vmem:[#allocation2 + $0x100] sm:$0xff]
    %v720 = vld [vmem:[#allocation2 + $0x108] sm:$0xff]
    %v721 = vld [vmem:[#allocation2 + $0x110] sm:$0xff]
    %v722 = vld [vmem:[#allocation2 + $0x118] sm:$0xff]
    %v723 = vld [vmem:[#allocation2 + $0x120] sm:$0xff]
    %v724 = vld [vmem:[#allocation2 + $0x128] sm:$0xff]
    %v725 = vld [vmem:[#allocation2 + $0x130] sm:$0xff]
    %v726 = vld [vmem:[#allocation2 + $0x138] sm:$0xff]
    %v727 = vld [vmem:[#allocation2 + $0x140] sm:$0xff]
    %v728 = vld [vmem:[#allocation2 + $0x148] sm:$0xff]
    %v729 = vld [vmem:[#allocation2 + $0x150] sm:$0xff]
    %v730 = vld [vmem:[#allocation2 + $0x158] sm:$0xff]
    %v731 = vld [vmem:[#allocation2 + $0x160] sm:$0xff]
    %v732 = vld [vmem:[#allocation2 + $0x168] sm:$0xff]
    %v733 = vld [vmem:[#allocation2 + $0x170] sm:$0xff]
    %v734 = vld [vmem:[#allocation2 + $0x178] sm:$0xff]
    %v735 = vld [vmem:[%s6] sm:$0x7]
    %v737 = vlaneseq
    %v738 = vshrl.u32 %v737, 7
    %v739 = vsub.s32 0, %v738
    %v740 = vrot.slane %v735, %v739
    %v741 = vlaneseq
    %v742 = vshrl.u32 %v741, 7
    %v743 = vsub.s32 1, %v742
    %v744 = vrot.slane %v735, %v743
    %v745 = vlaneseq
    %v746 = vshrl.u32 %v745, 7
    %v747 = vsub.s32 2, %v746
    %v748 = vrot.slane %v735, %v747
    %752 = vmatprep.subr.mxu0 %v688
    %753 = vmatpush1.msra.mxu0 %v687
    %754 = vmatprep.subr.mxu0 %v691
    %755 = vmatpush1.msra.mxu0 %v690
    %756 = vmatprep.subr.mxu0 %v694
    %757 = vmatpush1.msra.mxu0 %v693
    %758 = vmatprep.subr.mxu0 %v697
    %759 = vmatpush1.msra.mxu0 %v696
    %760 = vmatprep.subr.mxu0 %v700
    %761 = vmatpush1.msra.mxu0 %v699
    %762 = vmatprep.subr.mxu0 %v703
    %763 = vmatpush1.msra.mxu0 %v702
    %764 = vmatprep.subr.mxu0 %v706
    %765 = vmatpush1.msra.mxu0 %v705
    %766 = vmatprep.subr.mxu0 %v709
    %767 = vmatpush1.msra.mxu0 %v708
    %768 = vmatprep.subr.mxu0 %v712
    %769 = vmatpush1.msra.mxu0 %v711
    %770 = vmatprep.subr.mxu0 %v715
    %771 = vmatpush1.msra.mxu0 %v714
    %772 = vmatprep.subr.mxu0 %v718
    %773 = vmatpush1.msra.mxu0 %v717
    %774 = vmatprep.subr.mxu0 %v721
    %775 = vmatpush1.msra.mxu0 %v720
    %776 = vmatprep.subr.mxu0 %v724
    %777 = vmatpush1.msra.mxu0 %v723
    %778 = vmatprep.subr.mxu0 %v727
    %779 = vmatpush1.msra.mxu0 %v726
    %780 = vmatprep.subr.mxu0 %v730
    %781 = vmatpush1.msra.mxu0 %v729
    %782 = vmatprep.subr.mxu0 %v733
    %783 = vmatpush1.msra.mxu0 %v732
    %784 = vmatprep.subr.mxu0 0.0
    %785 = vmatpush1.msra.mxu0 0.0
    %786 = vmatprep.subr.mxu0 0.0
    %787 = vmatpush1.msra.mxu0 0.0
    %788 = vmatprep.subr.mxu0 0.0
    %789 = vmatpush1.msra.mxu0 0.0
    %790 = vmatprep.subr.mxu0 0.0
    %791 = vmatpush1.msra.mxu0 0.0
    %792 = vmatprep.subr.mxu0 0.0
    %793 = vmatpush1.msra.mxu0 0.0
    %794 = vmatprep.subr.mxu0 0.0
    %795 = vmatpush1.msra.mxu0 0.0
    %796 = vmatprep.subr.mxu0 0.0
    %797 = vmatpush1.msra.mxu0 0.0
    %798 = vmatprep.subr.mxu0 0.0
    %799 = vmatpush1.msra.mxu0 0.0
    %800 = vmatprep.subr.mxu0 0.0
    %801 = vmatpush1.msra.mxu0 0.0
    %802 = vmatprep.subr.mxu0 0.0
    %803 = vmatpush1.msra.mxu0 0.0
    %804 = vmatprep.subr.mxu0 0.0
    %805 = vmatpush1.msra.mxu0 0.0
    %806 = vmatprep.subr.mxu0 0.0
    %807 = vmatpush1.msra.mxu0 0.0
    %808 = vmatprep.subr.mxu0 0.0
    %809 = vmatpush1.msra.mxu0 0.0
    %810 = vmatprep.subr.mxu0 0.0
    %811 = vmatpush1.msra.mxu0 0.0
    %812 = vmatprep.subr.mxu0 0.0
    %813 = vmatpush1.msra.mxu0 0.0
    %814 = vmatprep.subr.mxu0 0.0
    %815 = vmatpush1.msra.mxu0 0.0
    %816 = vmatprep.mubr.f32.mxu0 0.0
    %817 = vmatmul.mubr.f32.gmra.mrb[0].mxu0 0.0
    %v818 = vpop.f32.mrb[0].mxu0
    %v819 = vadd.f32 %v740, %v818
    %v820 = vpop.f32.mrb[0].mxu0
    %v821 = vadd.f32 %v744, %v820
    %822 = vdwg.mxu0
    %823 = vmatprep.subr.mxu0 0.0
    %824 = vmatpush1.msra.mxu0 %v689
    %825 = vmatprep.subr.mxu0 0.0
    %826 = vmatpush1.msra.mxu0 %v692
    %827 = vmatprep.subr.mxu0 0.0
    %828 = vmatpush1.msra.mxu0 %v695
    %829 = vmatprep.subr.mxu0 0.0
    %830 = vmatpush1.msra.mxu0 %v698
    %831 = vmatprep.subr.mxu0 0.0
    %832 = vmatpush1.msra.mxu0 %v701
    %833 = vmatprep.subr.mxu0 0.0
    %834 = vmatpush1.msra.mxu0 %v704
    %835 = vmatprep.subr.mxu0 0.0
    %836 = vmatpush1.msra.mxu0 %v707
    %837 = vmatprep.subr.mxu0 0.0
    %838 = vmatpush1.msra.mxu0 %v710
    %839 = vmatprep.subr.mxu0 0.0
    %840 = vmatpush1.msra.mxu0 %v713
    %841 = vmatprep.subr.mxu0 0.0
    %842 = vmatpush1.msra.mxu0 %v716
    %843 = vmatprep.subr.mxu0 0.0
    %844 = vmatpush1.msra.mxu0 %v719
    %845 = vmatprep.subr.mxu0 0.0
    %846 = vmatpush1.msra.mxu0 %v722
    %847 = vmatprep.subr.mxu0 0.0
    %848 = vmatpush1.msra.mxu0 %v725
    %849 = vmatprep.subr.mxu0 0.0
    %850 = vmatpush1.msra.mxu0 %v728
    %851 = vmatprep.subr.mxu0 0.0
    %852 = vmatpush1.msra.mxu0 %v731
    %853 = vmatprep.subr.mxu0 0.0
    %854 = vmatpush1.msra.mxu0 %v734
    %855 = vmatprep.subr.mxu0 0.0
    %856 = vmatpush1.msra.mxu0 0.0
    %857 = vmatprep.subr.mxu0 0.0
    %858 = vmatpush1.msra.mxu0 0.0
    %859 = vmatprep.subr.mxu0 0.0
    %860 = vmatpush1.msra.mxu0 0.0
    %861 = vmatprep.subr.mxu0 0.0
    %862 = vmatpush1.msra.mxu0 0.0
    %863 = vmatprep.subr.mxu0 0.0
    %864 = vmatpush1.msra.mxu0 0.0
    %865 = vmatprep.subr.mxu0 0.0
    %866 = vmatpush1.msra.mxu0 0.0
    %867 = vmatprep.subr.mxu0 0.0
    %868 = vmatpush1.msra.mxu0 0.0
    %869 = vmatprep.subr.mxu0 0.0
    %870 = vmatpush1.msra.mxu0 0.0
    %871 = vmatprep.subr.mxu0 0.0
    %872 = vmatpush1.msra.mxu0 0.0
    %873 = vmatprep.subr.mxu0 0.0
    %874 = vmatpush1.msra.mxu0 0.0
    %875 = vmatprep.subr.mxu0 0.0
    %876 = vmatpush1.msra.mxu0 0.0
    %877 = vmatprep.subr.mxu0 0.0
    %878 = vmatpush1.msra.mxu0 0.0
    %879 = vmatprep.subr.mxu0 0.0
    %880 = vmatpush1.msra.mxu0 0.0
    %881 = vmatprep.subr.mxu0 0.0
    %882 = vmatpush1.msra.mxu0 0.0
    %883 = vmatprep.subr.mxu0 0.0
    %884 = vmatpush1.msra.mxu0 0.0
    %885 = vmatprep.subr.mxu0 0.0
    %886 = vmatpush1.msra.mxu0 0.0
    %887 = vmatprep.mubr.f32.mxu0 0.0
    %888 = vmatmul.mubr.f32.gmra.mrb[0].mxu0 0.0
    %v889 = vpop.f32.mrb[0].mxu0
    %v890 = vadd.f32 %v748, %v889
    %v891 = vpop.f32.mrb[0].mxu0
    %892 = vdwg.mxu0
    %v893 = vadd.f32 %v663, %v819
    %v894 = vxor.u32 %v893, 2147483648
    %v895 = vmul.f32 %v894, 1.442695
    %v896 = vpow.pop %v895
    %v897 = vadd.f32 %v896, 1.0
    %v898 = vrcp.pop %v897
    %v899 = vmul.f32 1.0, %v898
    %v900 = vadd.f32 %v664, %v821
    %v901 = vxor.u32 %v900, 2147483648
    %v902 = vmul.f32 %v901, 1.442695
    %v903 = vpow.pop %v902
    %v904 = vadd.f32 %v903, 1.0
    %v905 = vrcp.pop %v904
    %v906 = vmul.f32 1.0, %v905
    %v907 = vmul.f32 %v899, %v890
    %v908 = vadd.f32 %v665, %v907
    %v909 = vtanh.pop %v908
    %v910 = vsub.f32 1.0, %v906
    %v911 = vmul.f32 %v910, %v909
    %v912 = vmul.f32 %v906, 0.0
    %v913 = vadd.f32 %v911, %v912
    %914 = vmatprep.subr.mxu0 %v688
    %915 = vmatpush1.msra.mxu0 %v687
    %916 = vmatprep.subr.mxu0 %v691
    %917 = vmatpush1.msra.mxu0 %v690
    %918 = vmatprep.subr.mxu0 %v694
    %919 = vmatpush1.msra.mxu0 %v693
    %920 = vmatprep.subr.mxu0 %v697
    %921 = vmatpush1.msra.mxu0 %v696
    %922 = vmatprep.subr.mxu0 %v700
    %923 = vmatpush1.msra.mxu0 %v699
    %924 = vmatprep.subr.mxu0 %v703
    %925 = vmatpush1.msra.mxu0 %v702
    %926 = vmatprep.subr.mxu0 %v706
    %927 = vmatpush1.msra.mxu0 %v705
    %928 = vmatprep.subr.mxu0 %v709
    %929 = vmatpush1.msra.mxu0 %v708
    %930 = vmatprep.subr.mxu0 %v712
    %931 = vmatpush1.msra.mxu0 %v711
    %932 = vmatprep.subr.mxu0 %v715
    %933 = vmatpush1.msra.mxu0 %v714
    %934 = vmatprep.subr.mxu0 %v718
    %935 = vmatpush1.msra.mxu0 %v717
    %936 = vmatprep.subr.mxu0 %v721
    %937 = vmatpush1.msra.mxu0 %v720
    %938 = vmatprep.subr.mxu0 %v724
    %939 = vmatpush1.msra.mxu0 %v723
    %940 = vmatprep.subr.mxu0 %v727
    %941 = vmatpush1.msra.mxu0 %v726
    %942 = vmatprep.subr.mxu0 %v730
    %943 = vmatpush1.msra.mxu0 %v729
    %944 = vmatprep.subr.mxu0 %v733
    %945 = vmatpush1.msra.mxu0 %v732
    %946 = vmatprep.subr.mxu0 0.0
    %947 = vmatpush1.msra.mxu0 0.0
    %948 = vmatprep.subr.mxu0 0.0
    %949 = vmatpush1.msra.mxu0 0.0
    %950 = vmatprep.subr.mxu0 0.0
    %951 = vmatpush1.msra.mxu0 0.0
    %952 = vmatprep.subr.mxu0 0.0
    %953 = vmatpush1.msra.mxu0 0.0
    %954 = vmatprep.subr.mxu0 0.0
    %955 = vmatpush1.msra.mxu0 0.0
    %956 = vmatprep.subr.mxu0 0.0
    %957 = vmatpush1.msra.mxu0 0.0
    %958 = vmatprep.subr.mxu0 0.0
    %959 = vmatpush1.msra.mxu0 0.0
    %960 = vmatprep.subr.mxu0 0.0
    %961 = vmatpush1.msra.mxu0 0.0
    %962 = vmatprep.subr.mxu0 0.0
    %963 = vmatpush1.msra.mxu0 0.0
    %964 = vmatprep.subr.mxu0 0.0
    %965 = vmatpush1.msra.mxu0 0.0
    %966 = vmatprep.subr.mxu0 0.0
    %967 = vmatpush1.msra.mxu0 0.0
    %968 = vmatprep.subr.mxu0 0.0
    %969 = vmatpush1.msra.mxu0 0.0
    %970 = vmatprep.subr.mxu0 0.0
    %971 = vmatpush1.msra.mxu0 0.0
    %972 = vmatprep.subr.mxu0 0.0
    %973 = vmatpush1.msra.mxu0 0.0
    %974 = vmatprep.subr.mxu0 0.0
    %975 = vmatpush1.msra.mxu0 0.0
    %976 = vmatprep.subr.mxu0 0.0
    %977 = vmatpush1.msra.mxu0 0.0
    %978 = vmatprep.mubr.f32.mxu0 0.0
    %979 = vmatmul.mubr.f32.gmra.mrb[0].mxu0 %v913
    %v980 = vpop.f32.mrb[0].mxu0
    %v981 = vadd.f32 %v740, %v980
    %v982 = vpop.f32.mrb[0].mxu0
    %v983 = vadd.f32 %v744, %v982
    %984 = vdwg.mxu0
    %985 = vmatprep.subr.mxu0 0.0
    %986 = vmatpush1.msra.mxu0 %v689
    %987 = vmatprep.subr.mxu0 0.0
    %988 = vmatpush1.msra.mxu0 %v692
    %989 = vmatprep.subr.mxu0 0.0
    %990 = vmatpush1.msra.mxu0 %v695
    %991 = vmatprep.subr.mxu0 0.0
    %992 = vmatpush1.msra.mxu0 %v698
    %993 = vmatprep.subr.mxu0 0.0
    %994 = vmatpush1.msra.mxu0 %v701
    %995 = vmatprep.subr.mxu0 0.0
    %996 = vmatpush1.msra.mxu0 %v704
    %997 = vmatprep.subr.mxu0 0.0
    %998 = vmatpush1.msra.mxu0 %v707
    %999 = vmatprep.subr.mxu0 0.0
    %1000 = vmatpush1.msra.mxu0 %v710
    %1001 = vmatprep.subr.mxu0 0.0
    %1002 = vmatpush1.msra.mxu0 %v713
    %1003 = vmatprep.subr.mxu0 0.0
    %1004 = vmatpush1.msra.mxu0 %v716
    %1005 = vmatprep.subr.mxu0 0.0
    %1006 = vmatpush1.msra.mxu0 %v719
    %1007 = vmatprep.subr.mxu0 0.0
    %1008 = vmatpush1.msra.mxu0 %v722
    %1009 = vmatprep.subr.mxu0 0.0
    %1010 = vmatpush1.msra.mxu0 %v725
    %1011 = vmatprep.subr.mxu0 0.0
    %1012 = vmatpush1.msra.mxu0 %v728
    %1013 = vmatprep.subr.mxu0 0.0
    %1014 = vmatpush1.msra.mxu0 %v731
    %1015 = vmatprep.subr.mxu0 0.0
    %1016 = vmatpush1.msra.mxu0 %v734
    %1017 = vmatprep.subr.mxu0 0.0
    %1018 = vmatpush1.msra.mxu0 0.0
    %1019 = vmatprep.subr.mxu0 0.0
    %1020 = vmatpush1.msra.mxu0 0.0
    %1021 = vmatprep.subr.mxu0 0.0
    %1022 = vmatpush1.msra.mxu0 0.0
    %1023 = vmatprep.subr.mxu0 0.0
    %1024 = vmatpush1.msra.mxu0 0.0
    %1025 = vmatprep.subr.mxu0 0.0
    %1026 = vmatpush1.msra.mxu0 0.0
    %1027 = vmatprep.subr.mxu0 0.0
    %1028 = vmatpush1.msra.mxu0 0.0
    %1029 = vmatprep.subr.mxu0 0.0
    %1030 = vmatpush1.msra.mxu0 0.0
    %1031 = vmatprep.subr.mxu0 0.0
    %1032 = vmatpush1.msra.mxu0 0.0
    %1033 = vmatprep.subr.mxu0 0.0
    %1034 = vmatpush1.msra.mxu0 0.0
    %1035 = vmatprep.subr.mxu0 0.0
    %1036 = vmatpush1.msra.mxu0 0.0
    %1037 = vmatprep.subr.mxu0 0.0
    %1038 = vmatpush1.msra.mxu0 0.0
    %1039 = vmatprep.subr.mxu0 0.0
    %1040 = vmatpush1.msra.mxu0 0.0
    %1041 = vmatprep.subr.mxu0 0.0
    %1042 = vmatpush1.msra.mxu0 0.0
    %1043 = vmatprep.subr.mxu0 0.0
    %1044 = vmatpush1.msra.mxu0 0.0
    %1045 = vmatprep.subr.mxu0 0.0
    %1046 = vmatpush1.msra.mxu0 0.0
    %1047 = vmatprep.subr.mxu0 0.0
    %1048 = vmatpush1.msra.mxu0 0.0
    %1049 = vmatprep.mubr.f32.mxu0 0.0
    %1050 = vmatmul.mubr.f32.gmra.mrb[0].mxu0 %v913
    %v1051 = vpop.f32.mrb[0].mxu0
    %v1052 = vadd.f32 %v748, %v1051
    %v1053 = vpop.f32.mrb[0].mxu0
    %1054 = vdwg.mxu0
    %v1055 = vadd.f32 %v666, %v981
    %v1056 = vxor.u32 %v1055, 2147483648
    %v1057 = vmul.f32 %v1056, 1.442695
    %v1058 = vpow.pop %v1057
    %v1059 = vadd.f32 %v1058, 1.0
    %v1060 = vrcp.pop %v1059
    %v1061 = vmul.f32 1.0, %v1060
    %v1062 = vadd.f32 %v667, %v983
    %v1063 = vxor.u32 %v1062, 2147483648
    %v1064 = vmul.f32 %v1063, 1.442695
    %v1065 = vpow.pop %v1064
    %v1066 = vadd.f32 %v1065, 1.0
    %v1067 = vrcp.pop %v1066
    %v1068 = vmul.f32 1.0, %v1067
    %v1069 = vmul.f32 %v1061, %v1052
    %v1070 = vadd.f32 %v668, %v1069
    %v1071 = vtanh.pop %v1070
    %v1072 = vsub.f32 1.0, %v1068
    %v1073 = vmul.f32 %v1072, %v1071
    %v1074 = vmul.f32 %v1068, %v913
    %v1075 = vadd.f32 %v1073, %v1074
    %1076 = vmatprep.subr.mxu0 %v688
    %1077 = vmatpush1.msra.mxu0 %v687
    %1078 = vmatprep.subr.mxu0 %v691
    %1079 = vmatpush1.msra.mxu0 %v690
    %1080 = vmatprep.subr.mxu0 %v694
    %1081 = vmatpush1.msra.mxu0 %v693
    %1082 = vmatprep.subr.mxu0 %v697
    %1083 = vmatpush1.msra.mxu0 %v696
    %1084 = vmatprep.subr.mxu0 %v700
    %1085 = vmatpush1.msra.mxu0 %v699
    %1086 = vmatprep.subr.mxu0 %v703
    %1087 = vmatpush1.msra.mxu0 %v702
    %1088 = vmatprep.subr.mxu0 %v706
    %1089 = vmatpush1.msra.mxu0 %v705
    %1090 = vmatprep.subr.mxu0 %v709
    %1091 = vmatpush1.msra.mxu0 %v708
    %1092 = vmatprep.subr.mxu0 %v712
    %1093 = vmatpush1.msra.mxu0 %v711
    %1094 = vmatprep.subr.mxu0 %v715
    %1095 = vmatpush1.msra.mxu0 %v714
    %1096 = vmatprep.subr.mxu0 %v718
    %1097 = vmatpush1.msra.mxu0 %v717
    %1098 = vmatprep.subr.mxu0 %v721
    %1099 = vmatpush1.msra.mxu0 %v720
    %1100 = vmatprep.subr.mxu0 %v724
    %1101 = vmatpush1.msra.mxu0 %v723
    %1102 = vmatprep.subr.mxu0 %v727
    %1103 = vmatpush1.msra.mxu0 %v726
    %1104 = vmatprep.subr.mxu0 %v730
    %1105 = vmatpush1.msra.mxu0 %v729
    %1106 = vmatprep.subr.mxu0 %v733
    %1107 = vmatpush1.msra.mxu0 %v732
    %1108 = vmatprep.subr.mxu0 0.0
    %1109 = vmatpush1.msra.mxu0 0.0
    %1110 = vmatprep.subr.mxu0 0.0
    %1111 = vmatpush1.msra.mxu0 0.0
    %1112 = vmatprep.subr.mxu0 0.0
    %1113 = vmatpush1.msra.mxu0 0.0
    %1114 = vmatprep.subr.mxu0 0.0
    %1115 = vmatpush1.msra.mxu0 0.0
    %1116 = vmatprep.subr.mxu0 0.0
    %1117 = vmatpush1.msra.mxu0 0.0
    %1118 = vmatprep.subr.mxu0 0.0
    %1119 = vmatpush1.msra.mxu0 0.0
    %1120 = vmatprep.subr.mxu0 0.0
    %1121 = vmatpush1.msra.mxu0 0.0
    %1122 = vmatprep.subr.mxu0 0.0
    %1123 = vmatpush1.msra.mxu0 0.0
    %1124 = vmatprep.subr.mxu0 0.0
    %1125 = vmatpush1.msra.mxu0 0.0
    %1126 = vmatprep.subr.mxu0 0.0
    %1127 = vmatpush1.msra.mxu0 0.0
    %1128 = vmatprep.subr.mxu0 0.0
    %1129 = vmatpush1.msra.mxu0 0.0
    %1130 = vmatprep.subr.mxu0 0.0
    %1131 = vmatpush1.msra.mxu0 0.0
    %1132 = vmatprep.subr.mxu0 0.0
    %1133 = vmatpush1.msra.mxu0 0.0
    %1134 = vmatprep.subr.mxu0 0.0
    %1135 = vmatpush1.msra.mxu0 0.0
    %1136 = vmatprep.subr.mxu0 0.0
    %1137 = vmatpush1.msra.mxu0 0.0
    %1138 = vmatprep.subr.mxu0 0.0
    %1139 = vmatpush1.msra.mxu0 0.0
    %1140 = vmatprep.mubr.f32.mxu0 0.0
    %1141 = vmatmul.mubr.f32.gmra.mrb[0].mxu0 %v1075
    %v1142 = vpop.f32.mrb[0].mxu0
    %v1143 = vadd.f32 %v740, %v1142
    %v1144 = vpop.f32.mrb[0].mxu0
    %v1145 = vadd.f32 %v744, %v1144
    %1146 = vdwg.mxu0
    %1147 = vmatprep.subr.mxu0 0.0
    %1148 = vmatpush1.msra.mxu0 %v689
    %1149 = vmatprep.subr.mxu0 0.0
    %1150 = vmatpush1.msra.mxu0 %v692
    %1151 = vmatprep.subr.mxu0 0.0
    %1152 = vmatpush1.msra.mxu0 %v695
    %1153 = vmatprep.subr.mxu0 0.0
    %1154 = vmatpush1.msra.mxu0 %v698
    %1155 = vmatprep.subr.mxu0 0.0
    %1156 = vmatpush1.msra.mxu0 %v701
    %1157 = vmatprep.subr.mxu0 0.0
    %1158 = vmatpush1.msra.mxu0 %v704
    %1159 = vmatprep.subr.mxu0 0.0
    %1160 = vmatpush1.msra.mxu0 %v707
    %1161 = vmatprep.subr.mxu0 0.0
    %1162 = vmatpush1.msra.mxu0 %v710
    %1163 = vmatprep.subr.mxu0 0.0
    %1164 = vmatpush1.msra.mxu0 %v713
    %1165 = vmatprep.subr.mxu0 0.0
    %1166 = vmatpush1.msra.mxu0 %v716
    %1167 = vmatprep.subr.mxu0 0.0
    %1168 = vmatpush1.msra.mxu0 %v719
    %1169 = vmatprep.subr.mxu0 0.0
    %1170 = vmatpush1.msra.mxu0 %v722
    %1171 = vmatprep.subr.mxu0 0.0
    %1172 = vmatpush1.msra.mxu0 %v725
    %1173 = vmatprep.subr.mxu0 0.0
    %1174 = vmatpush1.msra.mxu0 %v728
    %1175 = vmatprep.subr.mxu0 0.0
    %1176 = vmatpush1.msra.mxu0 %v731
    %1177 = vmatprep.subr.mxu0 0.0
    %1178 = vmatpush1.msra.mxu0 %v734
    %1179 = vmatprep.subr.mxu0 0.0
    %1180 = vmatpush1.msra.mxu0 0.0
    %1181 = vmatprep.subr.mxu0 0.0
    %1182 = vmatpush1.msra.mxu0 0.0
    %1183 = vmatprep.subr.mxu0 0.0
    %1184 = vmatpush1.msra.mxu0 0.0
    %1185 = vmatprep.subr.mxu0 0.0
    %1186 = vmatpush1.msra.mxu0 0.0
    %1187 = vmatprep.subr.mxu0 0.0
    %1188 = vmatpush1.msra.mxu0 0.0
    %1189 = vmatprep.subr.mxu0 0.0
    %1190 = vmatpush1.msra.mxu0 0.0
    %1191 = vmatprep.subr.mxu0 0.0
    %1192 = vmatpush1.msra.mxu0 0.0
    %1193 = vmatprep.subr.mxu0 0.0
    %1194 = vmatpush1.msra.mxu0 0.0
    %1195 = vmatprep.subr.mxu0 0.0
    %1196 = vmatpush1.msra.mxu0 0.0
    %1197 = vmatprep.subr.mxu0 0.0
    %1198 = vmatpush1.msra.mxu0 0.0
    %1199 = vmatprep.subr.mxu0 0.0
    %1200 = vmatpush1.msra.mxu0 0.0
    %1201 = vmatprep.subr.mxu0 0.0
    %1202 = vmatpush1.msra.mxu0 0.0
    %1203 = vmatprep.subr.mxu0 0.0
    %1204 = vmatpush1.msra.mxu0 0.0
    %1205 = vmatprep.subr.mxu0 0.0
    %1206 = vmatpush1.msra.mxu0 0.0
    %1207 = vmatprep.subr.mxu0 0.0
    %1208 = vmatpush1.msra.mxu0 0.0
    %1209 = vmatprep.subr.mxu0 0.0
    %1210 = vmatpush1.msra.mxu0 0.0
    %1211 = vmatprep.mubr.f32.mxu0 0.0
    %1212 = vmatmul.mubr.f32.gmra.mrb[0].mxu0 %v1075
    %v1213 = vpop.f32.mrb[0].mxu0
    %v1214 = vadd.f32 %v748, %v1213
    %v1215 = vpop.f32.mrb[0].mxu0
    %1216 = vdwg.mxu0
    %v1217 = vadd.f32 %v669, %v1143
    %v1218 = vxor.u32 %v1217, 2147483648
    %v1219 = vmul.f32 %v1218, 1.442695
    %v1220 = vpow.pop %v1219
    %v1221 = vadd.f32 %v1220, 1.0
    %v1222 = vrcp.pop %v1221
    %v1223 = vmul.f32 1.0, %v1222
    %v1224 = vadd.f32 %v670, %v1145
    %v1225 = vxor.u32 %v1224, 2147483648
    %v1226 = vmul.f32 %v1225, 1.442695
    %v1227 = vpow.pop %v1226
    %v1228 = vadd.f32 %v1227, 1.0
    %v1229 = vrcp.pop %v1228
    %v1230 = vmul.f32 1.0, %v1229
    %v1231 = vmul.f32 %v1223, %v1214
    %v1232 = vadd.f32 %v671, %v1231
    %v1233 = vtanh.pop %v1232
    %v1234 = vsub.f32 1.0, %v1230
    %v1235 = vmul.f32 %v1234, %v1233
    %v1236 = vmul.f32 %v1230, %v1075
    %v1237 = vadd.f32 %v1235, %v1236
    %1238 = vmatprep.subr.mxu0 %v688
    %1239 = vmatpush1.msra.mxu0 %v687
    %1240 = vmatprep.subr.mxu0 %v691
    %1241 = vmatpush1.msra.mxu0 %v690
    %1242 = vmatprep.subr.mxu0 %v694
    %1243 = vmatpush1.msra.mxu0 %v693
    %1244 = vmatprep.subr.mxu0 %v697
    %1245 = vmatpush1.msra.mxu0 %v696
    %1246 = vmatprep.subr.mxu0 %v700
    %1247 = vmatpush1.msra.mxu0 %v699
    %1248 = vmatprep.subr.mxu0 %v703
    %1249 = vmatpush1.msra.mxu0 %v702
    %1250 = vmatprep.subr.mxu0 %v706
    %1251 = vmatpush1.msra.mxu0 %v705
    %1252 = vmatprep.subr.mxu0 %v709
    %1253 = vmatpush1.msra.mxu0 %v708
    %1254 = vmatprep.subr.mxu0 %v712
    %1255 = vmatpush1.msra.mxu0 %v711
    %1256 = vmatprep.subr.mxu0 %v715
    %1257 = vmatpush1.msra.mxu0 %v714
    %1258 = vmatprep.subr.mxu0 %v718
    %1259 = vmatpush1.msra.mxu0 %v717
    %1260 = vmatprep.subr.mxu0 %v721
    %1261 = vmatpush1.msra.mxu0 %v720
    %1262 = vmatprep.subr.mxu0 %v724
    %1263 = vmatpush1.msra.mxu0 %v723
    %1264 = vmatprep.subr.mxu0 %v727
    %1265 = vmatpush1.msra.mxu0 %v726
    %1266 = vmatprep.subr.mxu0 %v730
    %1267 = vmatpush1.msra.mxu0 %v729
    %1268 = vmatprep.subr.mxu0 %v733
    %1269 = vmatpush1.msra.mxu0 %v732
    %1270 = vmatprep.subr.mxu0 0.0
    %1271 = vmatpush1.msra.mxu0 0.0
    %1272 = vmatprep.subr.mxu0 0.0
    %1273 = vmatpush1.msra.mxu0 0.0
    %1274 = vmatprep.subr.mxu0 0.0
    %1275 = vmatpush1.msra.mxu0 0.0
    %1276 = vmatprep.subr.mxu0 0.0
    %1277 = vmatpush1.msra.mxu0 0.0
    %1278 = vmatprep.subr.mxu0 0.0
    %1279 = vmatpush1.msra.mxu0 0.0
    %1280 = vmatprep.subr.mxu0 0.0
    %1281 = vmatpush1.msra.mxu0 0.0
    %1282 = vmatprep.subr.mxu0 0.0
    %1283 = vmatpush1.msra.mxu0 0.0
    %1284 = vmatprep.subr.mxu0 0.0
    %1285 = vmatpush1.msra.mxu0 0.0
    %1286 = vmatprep.subr.mxu0 0.0
    %1287 = vmatpush1.msra.mxu0 0.0
    %1288 = vmatprep.subr.mxu0 0.0
    %1289 = vmatpush1.msra.mxu0 0.0
    %1290 = vmatprep.subr.mxu0 0.0
    %1291 = vmatpush1.msra.mxu0 0.0
    %1292 = vmatprep.subr.mxu0 0.0
    %1293 = vmatpush1.msra.mxu0 0.0
    %1294 = vmatprep.subr.mxu0 0.0
    %1295 = vmatpush1.msra.mxu0 0.0
    %1296 = vmatprep.subr.mxu0 0.0
    %1297 = vmatpush1.msra.mxu0 0.0
    %1298 = vmatprep.subr.mxu0 0.0
    %1299 = vmatpush1.msra.mxu0 0.0
    %1300 = vmatprep.subr.mxu0 0.0
    %1301 = vmatpush1.msra.mxu0 0.0
    %1302 = vmatprep.mubr.f32.mxu0 0.0
    %1303 = vmatmul.mubr.f32.gmra.mrb[0].mxu0 %v1237
    %v1304 = vpop.f32.mrb[0].mxu0
    %v1305 = vadd.f32 %v740, %v1304
    %v1306 = vpop.f32.mrb[0].mxu0
    %v1307 = vadd.f32 %v744, %v1306
    %1308 = vdwg.mxu0
    %1309 = vmatprep.subr.mxu0 0.0
    %1310 = vmatpush1.msra.mxu0 %v689
    %1311 = vmatprep.subr.mxu0 0.0
    %1312 = vmatpush1.msra.mxu0 %v692
    %1313 = vmatprep.subr.mxu0 0.0
    %1314 = vmatpush1.msra.mxu0 %v695
    %1315 = vmatprep.subr.mxu0 0.0
    %1316 = vmatpush1.msra.mxu0 %v698
    %1317 = vmatprep.subr.mxu0 0.0
    %1318 = vmatpush1.msra.mxu0 %v701
    %1319 = vmatprep.subr.mxu0 0.0
    %1320 = vmatpush1.msra.mxu0 %v704
    %1321 = vmatprep.subr.mxu0 0.0
    %1322 = vmatpush1.msra.mxu0 %v707
    %1323 = vmatprep.subr.mxu0 0.0
    %1324 = vmatpush1.msra.mxu0 %v710
    %1325 = vmatprep.subr.mxu0 0.0
    %1326 = vmatpush1.msra.mxu0 %v713
    %1327 = vmatprep.subr.mxu0 0.0
    %1328 = vmatpush1.msra.mxu0 %v716
    %1329 = vmatprep.subr.mxu0 0.0
    %1330 = vmatpush1.msra.mxu0 %v719
    %1331 = vmatprep.subr.mxu0 0.0
    %1332 = vmatpush1.msra.mxu0 %v722
    %1333 = vmatprep.subr.mxu0 0.0
    %1334 = vmatpush1.msra.mxu0 %v725
    %1335 = vmatprep.subr.mxu0 0.0
    %1336 = vmatpush1.msra.mxu0 %v728
    %1337 = vmatprep.subr.mxu0 0.0
    %1338 = vmatpush1.msra.mxu0 %v731
    %1339 = vmatprep.subr.mxu0 0.0
    %1340 = vmatpush1.msra.mxu0 %v734
    %1341 = vmatprep.subr.mxu0 0.0
    %1342 = vmatpush1.msra.mxu0 0.0
    %1343 = vmatprep.subr.mxu0 0.0
    %1344 = vmatpush1.msra.mxu0 0.0
    %1345 = vmatprep.subr.mxu0 0.0
    %1346 = vmatpush1.msra.mxu0 0.0
    %1347 = vmatprep.subr.mxu0 0.0
    %1348 = vmatpush1.msra.mxu0 0.0
    %1349 = vmatprep.subr.mxu0 0.0
    %1350 = vmatpush1.msra.mxu0 0.0
    %1351 = vmatprep.subr.mxu0 0.0
    %1352 = vmatpush1.msra.mxu0 0.0
    %1353 = vmatprep.subr.mxu0 0.0
    %1354 = vmatpush1.msra.mxu0 0.0
    %1355 = vmatprep.subr.mxu0 0.0
    %1356 = vmatpush1.msra.mxu0 0.0
    %1357 = vmatprep.subr.mxu0 0.0
    %1358 = vmatpush1.msra.mxu0 0.0
    %1359 = vmatprep.subr.mxu0 0.0
    %1360 = vmatpush1.msra.mxu0 0.0
    %1361 = vmatprep.subr.mxu0 0.0
    %1362 = vmatpush1.msra.mxu0 0.0
    %1363 = vmatprep.subr.mxu0 0.0
    %1364 = vmatpush1.msra.mxu0 0.0
    %1365 = vmatprep.subr.mxu0 0.0
    %1366 = vmatpush1.msra.mxu0 0.0
    %1367 = vmatprep.subr.mxu0 0.0
    %1368 = vmatpush1.msra.mxu0 0.0
    %1369 = vmatprep.subr.mxu0 0.0
    %1370 = vmatpush1.msra.mxu0 0.0
    %1371 = vmatprep.subr.mxu0 0.0
    %1372 = vmatpush1.msra.mxu0 0.0
    %1373 = vmatprep.mubr.f32.mxu0 0.0
    %1374 = vmatmul.mubr.f32.gmra.mrb[0].mxu0 %v1237
    %v1375 = vpop.f32.mrb[0].mxu0
    %v1376 = vadd.f32 %v748, %v1375
    %v1377 = vpop.f32.mrb[0].mxu0
    %1378 = vdwg.mxu0
    %v1379 = vadd.f32 %v672, %v1305
    %v1380 = vxor.u32 %v1379, 2147483648
    %v1381 = vmul.f32 %v1380, 1.442695
    %v1382 = vpow.pop %v1381
    %v1383 = vadd.f32 %v1382, 1.0
    %v1384 = vrcp.pop %v1383
    %v1385 = vmul.f32 1.0, %v1384
    %v1386 = vadd.f32 %v673, %v1307
    %v1387 = vxor.u32 %v1386, 2147483648
    %v1388 = vmul.f32 %v1387, 1.442695
    %v1389 = vpow.pop %v1388
    %v1390 = vadd.f32 %v1389, 1.0
    %v1391 = vrcp.pop %v1390
    %v1392 = vmul.f32 1.0, %v1391
    %v1393 = vmul.f32 %v1385, %v1376
    %v1394 = vadd.f32 %v674, %v1393
    %v1395 = vtanh.pop %v1394
    %v1396 = vsub.f32 1.0, %v1392
    %v1397 = vmul.f32 %v1396, %v1395
    %v1398 = vmul.f32 %v1392, %v1237
    %v1399 = vadd.f32 %v1397, %v1398
    %1400 = vmatprep.subr.mxu0 %v688
    %1401 = vmatpush1.msra.mxu0 %v687
    %1402 = vmatprep.subr.mxu0 %v691
    %1403 = vmatpush1.msra.mxu0 %v690
    %1404 = vmatprep.subr.mxu0 %v694
    %1405 = vmatpush1.msra.mxu0 %v693
    %1406 = vmatprep.subr.mxu0 %v697
    %1407 = vmatpush1.msra.mxu0 %v696
    %1408 = vmatprep.subr.mxu0 %v700
    %1409 = vmatpush1.msra.mxu0 %v699
    %1410 = vmatprep.subr.mxu0 %v703
    %1411 = vmatpush1.msra.mxu0 %v702
    %1412 = vmatprep.subr.mxu0 %v706
    %1413 = vmatpush1.msra.mxu0 %v705
    %1414 = vmatprep.subr.mxu0 %v709
    %1415 = vmatpush1.msra.mxu0 %v708
    %1416 = vmatprep.subr.mxu0 %v712
    %1417 = vmatpush1.msra.mxu0 %v711
    %1418 = vmatprep.subr.mxu0 %v715
    %1419 = vmatpush1.msra.mxu0 %v714
    %1420 = vmatprep.subr.mxu0 %v718
    %1421 = vmatpush1.msra.mxu0 %v717
    %1422 = vmatprep.subr.mxu0 %v721
    %1423 = vmatpush1.msra.mxu0 %v720
    %1424 = vmatprep.subr.mxu0 %v724
    %1425 = vmatpush1.msra.mxu0 %v723
    %1426 = vmatprep.subr.mxu0 %v727
    %1427 = vmatpush1.msra.mxu0 %v726
    %1428 = vmatprep.subr.mxu0 %v730
    %1429 = vmatpush1.msra.mxu0 %v729
    %1430 = vmatprep.subr.mxu0 %v733
    %1431 = vmatpush1.msra.mxu0 %v732
    %1432 = vmatprep.subr.mxu0 0.0
    %1433 = vmatpush1.msra.mxu0 0.0
    %1434 = vmatprep.subr.mxu0 0.0
    %1435 = vmatpush1.msra.mxu0 0.0
    %1436 = vmatprep.subr.mxu0 0.0
    %1437 = vmatpush1.msra.mxu0 0.0
    %1438 = vmatprep.subr.mxu0 0.0
    %1439 = vmatpush1.msra.mxu0 0.0
    %1440 = vmatprep.subr.mxu0 0.0
    %1441 = vmatpush1.msra.mxu0 0.0
    %1442 = vmatprep.subr.mxu0 0.0
    %1443 = vmatpush1.msra.mxu0 0.0
    %1444 = vmatprep.subr.mxu0 0.0
    %1445 = vmatpush1.msra.mxu0 0.0
    %1446 = vmatprep.subr.mxu0 0.0
    %1447 = vmatpush1.msra.mxu0 0.0
    %1448 = vmatprep.subr.mxu0 0.0
    %1449 = vmatpush1.msra.mxu0 0.0
    %1450 = vmatprep.subr.mxu0 0.0
    %1451 = vmatpush1.msra.mxu0 0.0
    %1452 = vmatprep.subr.mxu0 0.0
    %1453 = vmatpush1.msra.mxu0 0.0
    %1454 = vmatprep.subr.mxu0 0.0
    %1455 = vmatpush1.msra.mxu0 0.0
    %1456 = vmatprep.subr.mxu0 0.0
    %1457 = vmatpush1.msra.mxu0 0.0
    %1458 = vmatprep.subr.mxu0 0.0
    %1459 = vmatpush1.msra.mxu0 0.0
    %1460 = vmatprep.subr.mxu0 0.0
    %1461 = vmatpush1.msra.mxu0 0.0
    %1462 = vmatprep.subr.mxu0 0.0
    %1463 = vmatpush1.msra.mxu0 0.0
    %1464 = vmatprep.mubr.f32.mxu0 0.0
    %1465 = vmatmul.mubr.f32.gmra.mrb[0].mxu0 %v1399
    %v1466 = vpop.f32.mrb[0].mxu0
    %v1467 = vadd.f32 %v740, %v1466
    %v1468 = vpop.f32.mrb[0].mxu0
    %v1469 = vadd.f32 %v744, %v1468
    %1470 = vdwg.mxu0
    %1471 = vmatprep.subr.mxu0 0.0
    %1472 = vmatpush1.msra.mxu0 %v689
    %1473 = vmatprep.subr.mxu0 0.0
    %1474 = vmatpush1.msra.mxu0 %v692
    %1475 = vmatprep.subr.mxu0 0.0
    %1476 = vmatpush1.msra.mxu0 %v695
    %1477 = vmatprep.subr.mxu0 0.0
    %1478 = vmatpush1.msra.mxu0 %v698
    %1479 = vmatprep.subr.mxu0 0.0
    %1480 = vmatpush1.msra.mxu0 %v701
    %1481 = vmatprep.subr.mxu0 0.0
    %1482 = vmatpush1.msra.mxu0 %v704
    %1483 = vmatprep.subr.mxu0 0.0
    %1484 = vmatpush1.msra.mxu0 %v707
    %1485 = vmatprep.subr.mxu0 0.0
    %1486 = vmatpush1.msra.mxu0 %v710
    %1487 = vmatprep.subr.mxu0 0.0
    %1488 = vmatpush1.msra.mxu0 %v713
    %1489 = vmatprep.subr.mxu0 0.0
    %1490 = vmatpush1.msra.mxu0 %v716
    %1491 = vmatprep.subr.mxu0 0.0
    %1492 = vmatpush1.msra.mxu0 %v719
    %1493 = vmatprep.subr.mxu0 0.0
    %1494 = vmatpush1.msra.mxu0 %v722
    %1495 = vmatprep.subr.mxu0 0.0
    %1496 = vmatpush1.msra.mxu0 %v725
    %1497 = vmatprep.subr.mxu0 0.0
    %1498 = vmatpush1.msra.mxu0 %v728
    %1499 = vmatprep.subr.mxu0 0.0
    %1500 = vmatpush1.msra.mxu0 %v731
    %1501 = vmatprep.subr.mxu0 0.0
    %1502 = vmatpush1.msra.mxu0 %v734
    %1503 = vmatprep.subr.mxu0 0.0
    %1504 = vmatpush1.msra.mxu0 0.0
    %1505 = vmatprep.subr.mxu0 0.0
    %1506 = vmatpush1.msra.mxu0 0.0
    %1507 = vmatprep.subr.mxu0 0.0
    %1508 = vmatpush1.msra.mxu0 0.0
    %1509 = vmatprep.subr.mxu0 0.0
    %1510 = vmatpush1.msra.mxu0 0.0
    %1511 = vmatprep.subr.mxu0 0.0
    %1512 = vmatpush1.msra.mxu0 0.0
    %1513 = vmatprep.subr.mxu0 0.0
    %1514 = vmatpush1.msra.mxu0 0.0
    %1515 = vmatprep.subr.mxu0 0.0
    %1516 = vmatpush1.msra.mxu0 0.0
    %1517 = vmatprep.subr.mxu0 0.0
    %1518 = vmatpush1.msra.mxu0 0.0
    %1519 = vmatprep.subr.mxu0 0.0
    %1520 = vmatpush1.msra.mxu0 0.0
    %1521 = vmatprep.subr.mxu0 0.0
    %1522 = vmatpush1.msra.mxu0 0.0
    %1523 = vmatprep.subr.mxu0 0.0
    %1524 = vmatpush1.msra.mxu0 0.0
    %1525 = vmatprep.subr.mxu0 0.0
    %1526 = vmatpush1.msra.mxu0 0.0
    %1527 = vmatprep.subr.mxu0 0.0
    %1528 = vmatpush1.msra.mxu0 0.0
    %1529 = vmatprep.subr.mxu0 0.0
    %1530 = vmatpush1.msra.mxu0 0.0
    %1531 = vmatprep.subr.mxu0 0.0
    %1532 = vmatpush1.msra.mxu0 0.0
    %1533 = vmatprep.subr.mxu0 0.0
    %1534 = vmatpush1.msra.mxu0 0.0
    %1535 = vmatprep.mubr.f32.mxu0 0.0
    %1536 = vmatmul.mubr.f32.gmra.mrb[0].mxu0 %v1399
    %v1537 = vpop.f32.mrb[0].mxu0
    %v1538 = vadd.f32 %v748, %v1537
    %v1539 = vpop.f32.mrb[0].mxu0
    %1540 = vdwg.mxu0
    %v1541 = vadd.f32 %v675, %v1467
    %v1542 = vxor.u32 %v1541, 2147483648
    %v1543 = vmul.f32 %v1542, 1.442695
    %v1544 = vpow.pop %v1543
    %v1545 = vadd.f32 %v1544, 1.0
    %v1546 = vrcp.pop %v1545
    %v1547 = vmul.f32 1.0, %v1546
    %v1548 = vadd.f32 %v676, %v1469
    %v1549 = vxor.u32 %v1548, 2147483648
    %v1550 = vmul.f32 %v1549, 1.442695
    %v1551 = vpow.pop %v1550
    %v1552 = vadd.f32 %v1551, 1.0
    %v1553 = vrcp.pop %v1552
    %v1554 = vmul.f32 1.0, %v1553
    %v1555 = vmul.f32 %v1547, %v1538
    %v1556 = vadd.f32 %v677, %v1555
    %v1557 = vtanh.pop %v1556
    %v1558 = vsub.f32 1.0, %v1554
    %v1559 = vmul.f32 %v1558, %v1557
    %v1560 = vmul.f32 %v1554, %v1399
    %v1561 = vadd.f32 %v1559, %v1560
    %1562 = vmatprep.subr.mxu0 %v688
    %1563 = vmatpush1.msra.mxu0 %v687
    %1564 = vmatprep.subr.mxu0 %v691
    %1565 = vmatpush1.msra.mxu0 %v690
    %1566 = vmatprep.subr.mxu0 %v694
    %1567 = vmatpush1.msra.mxu0 %v693
    %1568 = vmatprep.subr.mxu0 %v697
    %1569 = vmatpush1.msra.mxu0 %v696
    %1570 = vmatprep.subr.mxu0 %v700
    %1571 = vmatpush1.msra.mxu0 %v699
    %1572 = vmatprep.subr.mxu0 %v703
    %1573 = vmatpush1.msra.mxu0 %v702
    %1574 = vmatprep.subr.mxu0 %v706
    %1575 = vmatpush1.msra.mxu0 %v705
    %1576 = vmatprep.subr.mxu0 %v709
    %1577 = vmatpush1.msra.mxu0 %v708
    %1578 = vmatprep.subr.mxu0 %v712
    %1579 = vmatpush1.msra.mxu0 %v711
    %1580 = vmatprep.subr.mxu0 %v715
    %1581 = vmatpush1.msra.mxu0 %v714
    %1582 = vmatprep.subr.mxu0 %v718
    %1583 = vmatpush1.msra.mxu0 %v717
    %1584 = vmatprep.subr.mxu0 %v721
    %1585 = vmatpush1.msra.mxu0 %v720
    %1586 = vmatprep.subr.mxu0 %v724
    %1587 = vmatpush1.msra.mxu0 %v723
    %1588 = vmatprep.subr.mxu0 %v727
    %1589 = vmatpush1.msra.mxu0 %v726
    %1590 = vmatprep.subr.mxu0 %v730
    %1591 = vmatpush1.msra.mxu0 %v729
    %1592 = vmatprep.subr.mxu0 %v733
    %1593 = vmatpush1.msra.mxu0 %v732
    %1594 = vmatprep.subr.mxu0 0.0
    %1595 = vmatpush1.msra.mxu0 0.0
    %1596 = vmatprep.subr.mxu0 0.0
    %1597 = vmatpush1.msra.mxu0 0.0
    %1598 = vmatprep.subr.mxu0 0.0
    %1599 = vmatpush1.msra.mxu0 0.0
    %1600 = vmatprep.subr.mxu0 0.0
    %1601 = vmatpush1.msra.mxu0 0.0
    %1602 = vmatprep.subr.mxu0 0.0
    %1603 = vmatpush1.msra.mxu0 0.0
    %1604 = vmatprep.subr.mxu0 0.0
    %1605 = vmatpush1.msra.mxu0 0.0
    %1606 = vmatprep.subr.mxu0 0.0
    %1607 = vmatpush1.msra.mxu0 0.0
    %1608 = vmatprep.subr.mxu0 0.0
    %1609 = vmatpush1.msra.mxu0 0.0
    %1610 = vmatprep.subr.mxu0 0.0
    %1611 = vmatpush1.msra.mxu0 0.0
    %1612 = vmatprep.subr.mxu0 0.0
    %1613 = vmatpush1.msra.mxu0 0.0
    %1614 = vmatprep.subr.mxu0 0.0
    %1615 = vmatpush1.msra.mxu0 0.0
    %1616 = vmatprep.subr.mxu0 0.0
    %1617 = vmatpush1.msra.mxu0 0.0
    %1618 = vmatprep.subr.mxu0 0.0
    %1619 = vmatpush1.msra.mxu0 0.0
    %1620 = vmatprep.subr.mxu0 0.0
    %1621 = vmatpush1.msra.mxu0 0.0
    %1622 = vmatprep.subr.mxu0 0.0
    %1623 = vmatpush1.msra.mxu0 0.0
    %1624 = vmatprep.subr.mxu0 0.0
    %1625 = vmatpush1.msra.mxu0 0.0
    %1626 = vmatprep.mubr.f32.mxu0 0.0
    %1627 = vmatmul.mubr.f32.gmra.mrb[0].mxu0 %v1561
    %v1628 = vpop.f32.mrb[0].mxu0
    %v1629 = vadd.f32 %v740, %v1628
    %v1630 = vpop.f32.mrb[0].mxu0
    %v1631 = vadd.f32 %v744, %v1630
    %1632 = vdwg.mxu0
    %1633 = vmatprep.subr.mxu0 0.0
    %1634 = vmatpush1.msra.mxu0 %v689
    %1635 = vmatprep.subr.mxu0 0.0
    %1636 = vmatpush1.msra.mxu0 %v692
    %1637 = vmatprep.subr.mxu0 0.0
    %1638 = vmatpush1.msra.mxu0 %v695
    %1639 = vmatprep.subr.mxu0 0.0
    %1640 = vmatpush1.msra.mxu0 %v698
    %1641 = vmatprep.subr.mxu0 0.0
    %1642 = vmatpush1.msra.mxu0 %v701
    %1643 = vmatprep.subr.mxu0 0.0
    %1644 = vmatpush1.msra.mxu0 %v704
    %1645 = vmatprep.subr.mxu0 0.0
    %1646 = vmatpush1.msra.mxu0 %v707
    %1647 = vmatprep.subr.mxu0 0.0
    %1648 = vmatpush1.msra.mxu0 %v710
    %1649 = vmatprep.subr.mxu0 0.0
    %1650 = vmatpush1.msra.mxu0 %v713
    %1651 = vmatprep.subr.mxu0 0.0
    %1652 = vmatpush1.msra.mxu0 %v716
    %1653 = vmatprep.subr.mxu0 0.0
    %1654 = vmatpush1.msra.mxu0 %v719
    %1655 = vmatprep.subr.mxu0 0.0
    %1656 = vmatpush1.msra.mxu0 %v722
    %1657 = vmatprep.subr.mxu0 0.0
    %1658 = vmatpush1.msra.mxu0 %v725
    %1659 = vmatprep.subr.mxu0 0.0
    %1660 = vmatpush1.msra.mxu0 %v728
    %1661 = vmatprep.subr.mxu0 0.0
    %1662 = vmatpush1.msra.mxu0 %v731
    %1663 = vmatprep.subr.mxu0 0.0
    %1664 = vmatpush1.msra.mxu0 %v734
    %1665 = vmatprep.subr.mxu0 0.0
    %1666 = vmatpush1.msra.mxu0 0.0
    %1667 = vmatprep.subr.mxu0 0.0
    %1668 = vmatpush1.msra.mxu0 0.0
    %1669 = vmatprep.subr.mxu0 0.0
    %1670 = vmatpush1.msra.mxu0 0.0
    %1671 = vmatprep.subr.mxu0 0.0
    %1672 = vmatpush1.msra.mxu0 0.0
    %1673 = vmatprep.subr.mxu0 0.0
    %1674 = vmatpush1.msra.mxu0 0.0
    %1675 = vmatprep.subr.mxu0 0.0
    %1676 = vmatpush1.msra.mxu0 0.0
    %1677 = vmatprep.subr.mxu0 0.0
    %1678 = vmatpush1.msra.mxu0 0.0
    %1679 = vmatprep.subr.mxu0 0.0
    %1680 = vmatpush1.msra.mxu0 0.0
    %1681 = vmatprep.subr.mxu0 0.0
    %1682 = vmatpush1.msra.mxu0 0.0
    %1683 = vmatprep.subr.mxu0 0.0
    %1684 = vmatpush1.msra.mxu0 0.0
    %1685 = vmatprep.subr.mxu0 0.0
    %1686 = vmatpush1.msra.mxu0 0.0
    %1687 = vmatprep.subr.mxu0 0.0
    %1688 = vmatpush1.msra.mxu0 0.0
    %1689 = vmatprep.subr.mxu0 0.0
    %1690 = vmatpush1.msra.mxu0 0.0
    %1691 = vmatprep.subr.mxu0 0.0
    %1692 = vmatpush1.msra.mxu0 0.0
    %1693 = vmatprep.subr.mxu0 0.0
    %1694 = vmatpush1.msra.mxu0 0.0
    %1695 = vmatprep.subr.mxu0 0.0
    %1696 = vmatpush1.msra.mxu0 0.0
    %1697 = vmatprep.mubr.f32.mxu0 0.0
    %1698 = vmatmul.mubr.f32.gmra.mrb[0].mxu0 %v1561
    %v1699 = vpop.f32.mrb[0].mxu0
    %v1700 = vadd.f32 %v748, %v1699
    %v1701 = vpop.f32.mrb[0].mxu0
    %1702 = vdwg.mxu0
    %v1703 = vadd.f32 %v678, %v1629
    %v1704 = vxor.u32 %v1703, 2147483648
    %v1705 = vmul.f32 %v1704, 1.442695
    %v1706 = vpow.pop %v1705
    %v1707 = vadd.f32 %v1706, 1.0
    %v1708 = vrcp.pop %v1707
    %v1709 = vmul.f32 1.0, %v1708
    %v1710 = vadd.f32 %v679, %v1631
    %v1711 = vxor.u32 %v1710, 2147483648
    %v1712 = vmul.f32 %v1711, 1.442695
    %v1713 = vpow.pop %v1712
    %v1714 = vadd.f32 %v1713, 1.0
    %v1715 = vrcp.pop %v1714
    %v1716 = vmul.f32 1.0, %v1715
    %v1717 = vmul.f32 %v1709, %v1700
    %v1718 = vadd.f32 %v680, %v1717
    %v1719 = vtanh.pop %v1718
    %v1720 = vsub.f32 1.0, %v1716
    %v1721 = vmul.f32 %v1720, %v1719
    %v1722 = vmul.f32 %v1716, %v1561
    %v1723 = vadd.f32 %v1721, %v1722
    %1724 = vmatprep.subr.mxu0 %v688
    %1725 = vmatpush1.msra.mxu0 %v687
    %1726 = vmatprep.subr.mxu0 %v691
    %1727 = vmatpush1.msra.mxu0 %v690
    %1728 = vmatprep.subr.mxu0 %v694
    %1729 = vmatpush1.msra.mxu0 %v693
    %1730 = vmatprep.subr.mxu0 %v697
    %1731 = vmatpush1.msra.mxu0 %v696
    %1732 = vmatprep.subr.mxu0 %v700
    %1733 = vmatpush1.msra.mxu0 %v699
    %1734 = vmatprep.subr.mxu0 %v703
    %1735 = vmatpush1.msra.mxu0 %v702
    %1736 = vmatprep.subr.mxu0 %v706
    %1737 = vmatpush1.msra.mxu0 %v705
    %1738 = vmatprep.subr.mxu0 %v709
    %1739 = vmatpush1.msra.mxu0 %v708
    %1740 = vmatprep.subr.mxu0 %v712
    %1741 = vmatpush1.msra.mxu0 %v711
    %1742 = vmatprep.subr.mxu0 %v715
    %1743 = vmatpush1.msra.mxu0 %v714
    %1744 = vmatprep.subr.mxu0 %v718
    %1745 = vmatpush1.msra.mxu0 %v717
    %1746 = vmatprep.subr.mxu0 %v721
    %1747 = vmatpush1.msra.mxu0 %v720
    %1748 = vmatprep.subr.mxu0 %v724
    %1749 = vmatpush1.msra.mxu0 %v723
    %1750 = vmatprep.subr.mxu0 %v727
    %1751 = vmatpush1.msra.mxu0 %v726
    %1752 = vmatprep.subr.mxu0 %v730
    %1753 = vmatpush1.msra.mxu0 %v729
    %1754 = vmatprep.subr.mxu0 %v733
    %1755 = vmatpush1.msra.mxu0 %v732
    %1756 = vmatprep.subr.mxu0 0.0
    %1757 = vmatpush1.msra.mxu0 0.0
    %1758 = vmatprep.subr.mxu0 0.0
    %1759 = vmatpush1.msra.mxu0 0.0
    %1760 = vmatprep.subr.mxu0 0.0
    %1761 = vmatpush1.msra.mxu0 0.0
    %1762 = vmatprep.subr.mxu0 0.0
    %1763 = vmatpush1.msra.mxu0 0.0
    %1764 = vmatprep.subr.mxu0 0.0
    %1765 = vmatpush1.msra.mxu0 0.0
    %1766 = vmatprep.subr.mxu0 0.0
    %1767 = vmatpush1.msra.mxu0 0.0
    %1768 = vmatprep.subr.mxu0 0.0
    %1769 = vmatpush1.msra.mxu0 0.0
    %1770 = vmatprep.subr.mxu0 0.0
    %1771 = vmatpush1.msra.mxu0 0.0
    %1772 = vmatprep.subr.mxu0 0.0
    %1773 = vmatpush1.msra.mxu0 0.0
    %1774 = vmatprep.subr.mxu0 0.0
    %1775 = vmatpush1.msra.mxu0 0.0
    %1776 = vmatprep.subr.mxu0 0.0
    %1777 = vmatpush1.msra.mxu0 0.0
    %1778 = vmatprep.subr.mxu0 0.0
    %1779 = vmatpush1.msra.mxu0 0.0
    %1780 = vmatprep.subr.mxu0 0.0
    %1781 = vmatpush1.msra.mxu0 0.0
    %1782 = vmatprep.subr.mxu0 0.0
    %1783 = vmatpush1.msra.mxu0 0.0
    %1784 = vmatprep.subr.mxu0 0.0
    %1785 = vmatpush1.msra.mxu0 0.0
    %1786 = vmatprep.subr.mxu0 0.0
    %1787 = vmatpush1.msra.mxu0 0.0
    %1788 = vmatprep.mubr.f32.mxu0 0.0
    %1789 = vmatmul.mubr.f32.gmra.mrb[0].mxu0 %v1723
    %v1790 = vpop.f32.mrb[0].mxu0
    %v1791 = vadd.f32 %v740, %v1790
    %v1792 = vpop.f32.mrb[0].mxu0
    %v1793 = vadd.f32 %v744, %v1792
    %1794 = vdwg.mxu0
    %1795 = vmatprep.subr.mxu0 0.0
    %1796 = vmatpush1.msra.mxu0 %v689
    %1797 = vmatprep.subr.mxu0 0.0
    %1798 = vmatpush1.msra.mxu0 %v692
    %1799 = vmatprep.subr.mxu0 0.0
    %1800 = vmatpush1.msra.mxu0 %v695
    %1801 = vmatprep.subr.mxu0 0.0
    %1802 = vmatpush1.msra.mxu0 %v698
    %1803 = vmatprep.subr.mxu0 0.0
    %1804 = vmatpush1.msra.mxu0 %v701
    %1805 = vmatprep.subr.mxu0 0.0
    %1806 = vmatpush1.msra.mxu0 %v704
    %1807 = vmatprep.subr.mxu0 0.0
    %1808 = vmatpush1.msra.mxu0 %v707
    %1809 = vmatprep.subr.mxu0 0.0
    %1810 = vmatpush1.msra.mxu0 %v710
    %1811 = vmatprep.subr.mxu0 0.0
    %1812 = vmatpush1.msra.mxu0 %v713
    %1813 = vmatprep.subr.mxu0 0.0
    %1814 = vmatpush1.msra.mxu0 %v716
    %1815 = vmatprep.subr.mxu0 0.0
    %1816 = vmatpush1.msra.mxu0 %v719
    %1817 = vmatprep.subr.mxu0 0.0
    %1818 = vmatpush1.msra.mxu0 %v722
    %1819 = vmatprep.subr.mxu0 0.0
    %1820 = vmatpush1.msra.mxu0 %v725
    %1821 = vmatprep.subr.mxu0 0.0
    %1822 = vmatpush1.msra.mxu0 %v728
    %1823 = vmatprep.subr.mxu0 0.0
    %1824 = vmatpush1.msra.mxu0 %v731
    %1825 = vmatprep.subr.mxu0 0.0
    %1826 = vmatpush1.msra.mxu0 %v734
    %1827 = vmatprep.subr.mxu0 0.0
    %1828 = vmatpush1.msra.mxu0 0.0
    %1829 = vmatprep.subr.mxu0 0.0
    %1830 = vmatpush1.msra.mxu0 0.0
    %1831 = vmatprep.subr.mxu0 0.0
    %1832 = vmatpush1.msra.mxu0 0.0
    %1833 = vmatprep.subr.mxu0 0.0
    %1834 = vmatpush1.msra.mxu0 0.0
    %1835 = vmatprep.subr.mxu0 0.0
    %1836 = vmatpush1.msra.mxu0 0.0
    %1837 = vmatprep.subr.mxu0 0.0
    %1838 = vmatpush1.msra.mxu0 0.0
    %1839 = vmatprep.subr.mxu0 0.0
    %1840 = vmatpush1.msra.mxu0 0.0
    %1841 = vmatprep.subr.mxu0 0.0
    %1842 = vmatpush1.msra.mxu0 0.0
    %1843 = vmatprep.subr.mxu0 0.0
    %1844 = vmatpush1.msra.mxu0 0.0
    %1845 = vmatprep.subr.mxu0 0.0
    %1846 = vmatpush1.msra.mxu0 0.0
    %1847 = vmatprep.subr.mxu0 0.0
    %1848 = vmatpush1.msra.mxu0 0.0
    %1849 = vmatprep.subr.mxu0 0.0
    %1850 = vmatpush1.msra.mxu0 0.0
    %1851 = vmatprep.subr.mxu0 0.0
    %1852 = vmatpush1.msra.mxu0 0.0
    %1853 = vmatprep.subr.mxu0 0.0
    %1854 = vmatpush1.msra.mxu0 0.0
    %1855 = vmatprep.subr.mxu0 0.0
    %1856 = vmatpush1.msra.mxu0 0.0
    %1857 = vmatprep.subr.mxu0 0.0
    %1858 = vmatpush1.msra.mxu0 0.0
    %1859 = vmatprep.mubr.f32.mxu0 0.0
    %1860 = vmatmul.mubr.f32.gmra.mrb[0].mxu0 %v1723
    %v1861 = vpop.f32.mrb[0].mxu0
    %v1862 = vadd.f32 %v748, %v1861
    %v1863 = vpop.f32.mrb[0].mxu0
    %1864 = vdwg.mxu0
    %v1865 = vadd.f32 %v681, %v1791
    %v1866 = vxor.u32 %v1865, 2147483648
    %v1867 = vmul.f32 %v1866, 1.442695
    %v1868 = vpow.pop %v1867
    %v1869 = vadd.f32 %v1868, 1.0
    %v1870 = vrcp.pop %v1869
    %v1871 = vmul.f32 1.0, %v1870
    %v1872 = vadd.f32 %v682, %v1793
    %v1873 = vxor.u32 %v1872, 2147483648
    %v1874 = vmul.f32 %v1873, 1.442695
    %v1875 = vpow.pop %v1874
    %v1876 = vadd.f32 %v1875, 1.0
    %v1877 = vrcp.pop %v1876
    %v1878 = vmul.f32 1.0, %v1877
    %v1879 = vmul.f32 %v1871, %v1862
    %v1880 = vadd.f32 %v683, %v1879
    %v1881 = vtanh.pop %v1880
    %v1882 = vsub.f32 1.0, %v1878
    %v1883 = vmul.f32 %v1882, %v1881
    %v1884 = vmul.f32 %v1878, %v1723
    %v1885 = vadd.f32 %v1883, %v1884
    %1886 = vmatprep.subr.mxu0 %v688
    %1887 = vmatpush1.msra.mxu0 %v687
    %1888 = vmatprep.subr.mxu0 %v691
    %1889 = vmatpush1.msra.mxu0 %v690
    %1890 = vmatprep.subr.mxu0 %v694
    %1891 = vmatpush1.msra.mxu0 %v693
    %1892 = vmatprep.subr.mxu0 %v697
    %1893 = vmatpush1.msra.mxu0 %v696
    %1894 = vmatprep.subr.mxu0 %v700
    %1895 = vmatpush1.msra.mxu0 %v699
    %1896 = vmatprep.subr.mxu0 %v703
    %1897 = vmatpush1.msra.mxu0 %v702
    %1898 = vmatprep.subr.mxu0 %v706
    %1899 = vmatpush1.msra.mxu0 %v705
    %1900 = vmatprep.subr.mxu0 %v709
    %1901 = vmatpush1.msra.mxu0 %v708
    %1902 = vmatprep.subr.mxu0 %v712
    %1903 = vmatpush1.msra.mxu0 %v711
    %1904 = vmatprep.subr.mxu0 %v715
    %1905 = vmatpush1.msra.mxu0 %v714
    %1906 = vmatprep.subr.mxu0 %v718
    %1907 = vmatpush1.msra.mxu0 %v717
    %1908 = vmatprep.subr.mxu0 %v721
    %1909 = vmatpush1.msra.mxu0 %v720
    %1910 = vmatprep.subr.mxu0 %v724
    %1911 = vmatpush1.msra.mxu0 %v723
    %1912 = vmatprep.subr.mxu0 %v727
    %1913 = vmatpush1.msra.mxu0 %v726
    %1914 = vmatprep.subr.mxu0 %v730
    %1915 = vmatpush1.msra.mxu0 %v729
    %1916 = vmatprep.subr.mxu0 %v733
    %1917 = vmatpush1.msra.mxu0 %v732
    %1918 = vmatprep.subr.mxu0 0.0
    %1919 = vmatpush1.msra.mxu0 0.0
    %1920 = vmatprep.subr.mxu0 0.0
    %1921 = vmatpush1.msra.mxu0 0.0
    %1922 = vmatprep.subr.mxu0 0.0
    %1923 = vmatpush1.msra.mxu0 0.0
    %1924 = vmatprep.subr.mxu0 0.0
    %1925 = vmatpush1.msra.mxu0 0.0
    %1926 = vmatprep.subr.mxu0 0.0
    %1927 = vmatpush1.msra.mxu0 0.0
    %1928 = vmatprep.subr.mxu0 0.0
    %1929 = vmatpush1.msra.mxu0 0.0
    %1930 = vmatprep.subr.mxu0 0.0
    %1931 = vmatpush1.msra.mxu0 0.0
    %1932 = vmatprep.subr.mxu0 0.0
    %1933 = vmatpush1.msra.mxu0 0.0
    %1934 = vmatprep.subr.mxu0 0.0
    %1935 = vmatpush1.msra.mxu0 0.0
    %1936 = vmatprep.subr.mxu0 0.0
    %1937 = vmatpush1.msra.mxu0 0.0
    %1938 = vmatprep.subr.mxu0 0.0
    %1939 = vmatpush1.msra.mxu0 0.0
    %1940 = vmatprep.subr.mxu0 0.0
    %1941 = vmatpush1.msra.mxu0 0.0
    %1942 = vmatprep.subr.mxu0 0.0
    %1943 = vmatpush1.msra.mxu0 0.0
    %1944 = vmatprep.subr.mxu0 0.0
    %1945 = vmatpush1.msra.mxu0 0.0
    %1946 = vmatprep.subr.mxu0 0.0
    %1947 = vmatpush1.msra.mxu0 0.0
    %1948 = vmatprep.subr.mxu0 0.0
    %1949 = vmatpush1.msra.mxu0 0.0
    %1950 = vmatprep.mubr.f32.mxu0 0.0
    %1951 = vmatmul.mubr.f32.gmra.mrb[0].mxu0 %v1885
    %v1952 = vpop.f32.mrb[0].mxu0
    %v1953 = vadd.f32 %v740, %v1952
    %v1954 = vpop.f32.mrb[0].mxu0
    %v1955 = vadd.f32 %v744, %v1954
    %1956 = vdwg.mxu0
    %1957 = vmatprep.subr.mxu0 0.0
    %1958 = vmatpush1.msra.mxu0 %v689
    %1959 = vmatprep.subr.mxu0 0.0
    %1960 = vmatpush1.msra.mxu0 %v692
    %1961 = vmatprep.subr.mxu0 0.0
    %1962 = vmatpush1.msra.mxu0 %v695
    %1963 = vmatprep.subr.mxu0 0.0
    %1964 = vmatpush1.msra.mxu0 %v698
    %1965 = vmatprep.subr.mxu0 0.0
    %1966 = vmatpush1.msra.mxu0 %v701
    %1967 = vmatprep.subr.mxu0 0.0
    %1968 = vmatpush1.msra.mxu0 %v704
    %1969 = vmatprep.subr.mxu0 0.0
    %1970 = vmatpush1.msra.mxu0 %v707
    %1971 = vmatprep.subr.mxu0 0.0
    %1972 = vmatpush1.msra.mxu0 %v710
    %1973 = vmatprep.subr.mxu0 0.0
    %1974 = vmatpush1.msra.mxu0 %v713
    %1975 = vmatprep.subr.mxu0 0.0
    %1976 = vmatpush1.msra.mxu0 %v716
    %1977 = vmatprep.subr.mxu0 0.0
    %1978 = vmatpush1.msra.mxu0 %v719
    %1979 = vmatprep.subr.mxu0 0.0
    %1980 = vmatpush1.msra.mxu0 %v722
    %1981 = vmatprep.subr.mxu0 0.0
    %1982 = vmatpush1.msra.mxu0 %v725
    %1983 = vmatprep.subr.mxu0 0.0
    %1984 = vmatpush1.msra.mxu0 %v728
    %1985 = vmatprep.subr.mxu0 0.0
    %1986 = vmatpush1.msra.mxu0 %v731
    %1987 = vmatprep.subr.mxu0 0.0
    %1988 = vmatpush1.msra.mxu0 %v734
    %1989 = vmatprep.subr.mxu0 0.0
    %1990 = vmatpush1.msra.mxu0 0.0
    %1991 = vmatprep.subr.mxu0 0.0
    %1992 = vmatpush1.msra.mxu0 0.0
    %1993 = vmatprep.subr.mxu0 0.0
    %1994 = vmatpush1.msra.mxu0 0.0
    %1995 = vmatprep.subr.mxu0 0.0
    %1996 = vmatpush1.msra.mxu0 0.0
    %1997 = vmatprep.subr.mxu0 0.0
    %1998 = vmatpush1.msra.mxu0 0.0
    %1999 = vmatprep.subr.mxu0 0.0
    %2000 = vmatpush1.msra.mxu0 0.0
    %2001 = vmatprep.subr.mxu0 0.0
    %2002 = vmatpush1.msra.mxu0 0.0
    %2003 = vmatprep.subr.mxu0 0.0
    %2004 = vmatpush1.msra.mxu0 0.0
    %2005 = vmatprep.subr.mxu0 0.0
    %2006 = vmatpush1.msra.mxu0 0.0
    %2007 = vmatprep.subr.mxu0 0.0
    %2008 = vmatpush1.msra.mxu0 0.0
    %2009 = vmatprep.subr.mxu0 0.0
    %2010 = vmatpush1.msra.mxu0 0.0
    %2011 = vmatprep.subr.mxu0 0.0
    %2012 = vmatpush1.msra.mxu0 0.0
    %2013 = vmatprep.subr.mxu0 0.0
    %2014 = vmatpush1.msra.mxu0 0.0
    %2015 = vmatprep.subr.mxu0 0.0
    %2016 = vmatpush1.msra.mxu0 0.0
    %2017 = vmatprep.subr.mxu0 0.0
    %2018 = vmatpush1.msra.mxu0 0.0
    %2019 = vmatprep.subr.mxu0 0.0
    %2020 = vmatpush1.msra.mxu0 0.0
    %2021 = vmatprep.mubr.f32.mxu0 0.0
    %2022 = vmatmul.mubr.f32.gmra.mrb[0].mxu0 %v1885
    %v2023 = vpop.f32.mrb[0].mxu0
    %v2024 = vadd.f32 %v748, %v2023
    %v2025 = vpop.f32.mrb[0].mxu0
    %2026 = vdwg.mxu0
    %v2027 = vadd.f32 %v684, %v1953
    %v2028 = vxor.u32 %v2027, 2147483648
    %v2029 = vmul.f32 %v2028, 1.442695
    %v2030 = vpow.pop %v2029
    %v2031 = vadd.f32 %v2030, 1.0
    %v2032 = vrcp.pop %v2031
    %v2033 = vmul.f32 1.0, %v2032
    %v2034 = vadd.f32 %v685, %v1955
    %v2035 = vxor.u32 %v2034, 2147483648
    %v2036 = vmul.f32 %v2035, 1.442695
    %v2037 = vpow.pop %v2036
    %v2038 = vadd.f32 %v2037, 1.0
    %v2039 = vrcp.pop %v2038
    %v2040 = vmul.f32 1.0, %v2039
    %v2041 = vmul.f32 %v2033, %v2024
    %v2042 = vadd.f32 %v686, %v2041
    %v2043 = vtanh.pop %v2042
    %v2044 = vsub.f32 1.0, %v2040
    %v2045 = vmul.f32 %v2044, %v2043
    %v2046 = vmul.f32 %v2040, %v1885
    %v2047 = vadd.f32 %v2045, %v2046
    %v2048 = vld [vmem:[%s7] sm:$0xff]
    %v2049 = vld [vmem:[%s7 + $0x8] sm:$0xff]
    %v2050 = vld [vmem:[%s7 + $0x10] sm:$0xff]
    %v2051 = vld [vmem:[%s7 + $0x18] sm:$0xff]
    %v2052 = vld [vmem:[%s7 + $0x20] sm:$0xff]
    %v2053 = vld [vmem:[%s7 + $0x28] sm:$0xff]
    %v2054 = vld [vmem:[%s7 + $0x30] sm:$0xff]
    %v2055 = vld [vmem:[%s7 + $0x38] sm:$0xff]
    %v2056 = vld [vmem:[%s7 + $0x40] sm:$0xff]
    %v2057 = vld [vmem:[%s7 + $0x48] sm:$0xff]
    %v2058 = vld [vmem:[%s7 + $0x50] sm:$0xff]
    %v2059 = vld [vmem:[%s7 + $0x58] sm:$0xff]
    %v2060 = vld [vmem:[%s7 + $0x60] sm:$0xff]
    %v2061 = vld [vmem:[%s7 + $0x68] sm:$0xff]
    %v2062 = vld [vmem:[%s7 + $0x70] sm:$0xff]
    %v2063 = vld [vmem:[%s7 + $0x78] sm:$0xff]
    %v2064 = vld [vmem:[%s8] sm:$0x1]
    %v2066 = vlaneseq
    %v2067 = vshrl.u32 %v2066, 7
    %v2068 = vsub.s32 0, %v2067
    %v2069 = vrot.slane %v2064, %v2068
    %2071 = vmatprep.subr.mxu0 0.0
    %2072 = vmatpush1.msra.mxu0 %v2048
    %2073 = vmatprep.subr.mxu0 0.0
    %2074 = vmatpush1.msra.mxu0 %v2049
    %2075 = vmatprep.subr.mxu0 0.0
    %2076 = vmatpush1.msra.mxu0 %v2050
    %2077 = vmatprep.subr.mxu0 0.0
    %2078 = vmatpush1.msra.mxu0 %v2051
    %2079 = vmatprep.subr.mxu0 0.0
    %2080 = vmatpush1.msra.mxu0 %v2052
    %2081 = vmatprep.subr.mxu0 0.0
    %2082 = vmatpush1.msra.mxu0 %v2053
    %2083 = vmatprep.subr.mxu0 0.0
    %2084 = vmatpush1.msra.mxu0 %v2054
    %2085 = vmatprep.subr.mxu0 0.0
    %2086 = vmatpush1.msra.mxu0 %v2055
    %2087 = vmatprep.subr.mxu0 0.0
    %2088 = vmatpush1.msra.mxu0 %v2056
    %2089 = vmatprep.subr.mxu0 0.0
    %2090 = vmatpush1.msra.mxu0 %v2057
    %2091 = vmatprep.subr.mxu0 0.0
    %2092 = vmatpush1.msra.mxu0 %v2058
    %2093 = vmatprep.subr.mxu0 0.0
    %2094 = vmatpush1.msra.mxu0 %v2059
    %2095 = vmatprep.subr.mxu0 0.0
    %2096 = vmatpush1.msra.mxu0 %v2060
    %2097 = vmatprep.subr.mxu0 0.0
    %2098 = vmatpush1.msra.mxu0 %v2061
    %2099 = vmatprep.subr.mxu0 0.0
    %2100 = vmatpush1.msra.mxu0 %v2062
    %2101 = vmatprep.subr.mxu0 0.0
    %2102 = vmatpush1.msra.mxu0 %v2063
    %2103 = vmatprep.subr.mxu0 0.0
    %2104 = vmatpush1.msra.mxu0 0.0
    %2105 = vmatprep.subr.mxu0 0.0
    %2106 = vmatpush1.msra.mxu0 0.0
    %2107 = vmatprep.subr.mxu0 0.0
    %2108 = vmatpush1.msra.mxu0 0.0
    %2109 = vmatprep.subr.mxu0 0.0
    %2110 = vmatpush1.msra.mxu0 0.0
    %2111 = vmatprep.subr.mxu0 0.0
    %2112 = vmatpush1.msra.mxu0 0.0
    %2113 = vmatprep.subr.mxu0 0.0
    %2114 = vmatpush1.msra.mxu0 0.0
    %2115 = vmatprep.subr.mxu0 0.0
    %2116 = vmatpush1.msra.mxu0 0.0
    %2117 = vmatprep.subr.mxu0 0.0
    %2118 = vmatpush1.msra.mxu0 0.0
    %2119 = vmatprep.subr.mxu0 0.0
    %2120 = vmatpush1.msra.mxu0 0.0
    %2121 = vmatprep.subr.mxu0 0.0
    %2122 = vmatpush1.msra.mxu0 0.0
    %2123 = vmatprep.subr.mxu0 0.0
    %2124 = vmatpush1.msra.mxu0 0.0
    %2125 = vmatprep.subr.mxu0 0.0
    %2126 = vmatpush1.msra.mxu0 0.0
    %2127 = vmatprep.subr.mxu0 0.0
    %2128 = vmatpush1.msra.mxu0 0.0
    %2129 = vmatprep.subr.mxu0 0.0
    %2130 = vmatpush1.msra.mxu0 0.0
    %2131 = vmatprep.subr.mxu0 0.0
    %2132 = vmatpush1.msra.mxu0 0.0
    %2133 = vmatprep.subr.mxu0 0.0
    %2134 = vmatpush1.msra.mxu0 0.0
    %2135 = vmatprep.mubr.f32.mxu0 0.0
    %2136 = vmatmul.mubr.f32.gmra.mrb[0].mxu0 %v2047
    %v2137 = vpop.f32.mrb[0].mxu0
    %v2138 = vadd.f32 %v2069, %v2137
    %v2139 = vpop.f32.mrb[0].mxu0
    %2140 = vdwg.mxu0
    %2142 = vrot.lane.b32.xlu0 %v156, 16
    %v2143 = vpop.permute.xlu0 %2142
    %vm2145 = vcmask 130048
    %v2146 = vsel %vm2145, %v2138, %v2143
    %vm2147 = vcmask 189440
    %2148 = vst.msk [vmem:[#allocation5] sm:$0x3] %vm2147, %v2146
    // Predicated region
    $region46: #{tpu_custom_call.1} parent=1 // pred_check
      _
    $region47: #{tpu_custom_call.1} parent=1 // pred_check_branch
      %2150 = sbr.rel (0) target = $region49
    $region48: #{tpu_custom_call.1} parent=1 // pred_region
      %s2152 = ssub.s32 32, 32
      %2153 = vsyncadd [#allocation4], %s2152
      %s2155 = sshll.u32 [#allocation5], 4
      %s2156 = int_to_ptr.vmem [resolvable:$true] %s2155
      %2158 = dma.vmem_to_hbm [thread:$0]  %s2156, 32, %s10, [#allocation4]
    $region49: #{tpu_custom_call.1} parent=1 // pred_fallthru
      _
    // Predicated region
    $region50: #{tpu_custom_call.1} parent=1 // pred_check
      _
    $region51: #{tpu_custom_call.1} parent=1 // pred_check_branch
      %2160 = sbr.rel (0) target = $region53
    $region52: #{tpu_custom_call.1} parent=1 // pred_region
      %2161 = dma.done [#allocation4], 32
    $region53: #{tpu_custom_call.1} parent=1 // pred_fallthru
      _
    %2162 = vsyncpa [#allocation3], 1
    %2163 = vsyncpa [#allocation4], 1

</llo_original>
